<compile_context>
chip_gen: v6e
topology: v6e:2x2x1
jax: 0.10.0
libtpu: 0.0.40
codegen_flags: <defaults>
</compile_context>

<pallas_src>
import functools

import jax
import jax.numpy as jnp
import numpy as np
from jax.experimental import pallas as pl
from jax.experimental.pallas import tpu as pltpu

_LANE = 128          # minimum Cout padding granularity (lane width)
_COUT_TILE = 256     # preferred output-channel tile (fills 256-wide v6e/v7x MXU)
_ROW_BLOCK = 32      # preferred output rows per grid step (VMEM-safe on v7x too)
_WO_ALIGN = 16       # output-width alignment (bf16 sublane packing)


def _round_up(x, m):
    return ((x + m - 1) // m) * m


def _conv_tap_kernel(x_ref, w_ref, b_ref, o_ref, *, bh, wo_pad, taps, cin_eff,
                     apply_leaky):
    """Compute a (bh, wo_pad, cout_tile) output tile of a stride-1 `taps x taps` conv.

    x_ref : (1, hin, win, cin_eff)            whole (padded / s2d) image, one batch elem
    w_ref : (taps, taps, cin_eff, cout_tile)  per-tap weights
    b_ref : (1, cout_tile)                    f32 bias
    o_ref : (1, bh, wo_pad, cout_tile)
    """
    r = pl.program_id(2)
    row0 = pl.multiple_of(r * bh, bh)
    cout_tile = w_ref.shape[-1]
    m = bh * wo_pad

    acc = jnp.zeros((m, cout_tile), dtype=jnp.float32)
    for ta in range(taps):
        for tb in range(taps):
            # Static (tb) / block-aligned (row0) slices straight into the MXU:
            # no concat, no cross-tile relayout (wo_pad is a multiple of 16).
            xs = x_ref[0, pl.ds(row0 + ta, bh), pl.ds(tb, wo_pad), :]
            acc = acc + jnp.dot(xs.reshape(m, cin_eff), w_ref[ta, tb],
                                preferred_element_type=jnp.float32)
    acc = acc + b_ref[...]                                  # f32 bias broadcast
    if apply_leaky:
        acc = jnp.where(acc >= 0.0, acc, 0.2 * acc)         # LeakyReLU(0.2) in f32
    o_ref[0] = acc.reshape(bh, wo_pad, cout_tile).astype(o_ref.dtype)


def conv2d_leaky_pallas(x_nhwc, w_hwio, bias, *, stride, apply_leaky,
                        compute_dtype=jnp.bfloat16):
    """Conv2d(kernel=4, stride in {1,2}, padding=2) [+ fused LeakyReLU(0.2)]."""
    N, H, W, Cin = x_nhwc.shape
    KH, KW, _, Cout = w_hwio.shape
    assert KH == 4 and KW == 4 and stride in (1, 2)
    pad = 2
    s = stride

    ho = (H + 2 * pad - KH) // s + 1
    wo = (W + 2 * pad - KW) // s + 1

    bh = min(_ROW_BLOCK, _round_up(ho, 8))
    ho_pad = _round_up(ho, bh)
    wo_pad = _round_up(wo, _WO_ALIGN)

    x = x_nhwc.astype(compute_dtype)      # cast BEFORE pad/s2d (matches reference)
    w = w_hwio.astype(compute_dtype)

    if s == 2:
        # Space-to-depth: stride-2 4x4 conv  ==  stride-1 2x2 conv on (hs, ws, 4*Cin).
        taps = 2
        cin_eff = 4 * Cin
        hin = ho_pad + taps - 1
        win = wo_pad + taps - 1
        # ONE pad (conv zero-pad + halo + alignment), then ONE s2d reshape/transpose.
        xp = jnp.pad(x, ((0, 0),
                         (pad, 2 * hin - pad - H),
                         (pad, 2 * win - pad - W),
                         (0, 0)))
        xp = xp.reshape(N, hin, 2, win, 2, Cin).transpose(0, 1, 3, 2, 4, 5)
        xp = xp.reshape(N, hin, win, cin_eff)
        # w[2*ta+p, 2*tb+q, c, o] -> wf[ta, tb, p*2Cin + q*Cin + c, o]
        wf = w.reshape(2, 2, 2, 2, Cin, Cout).transpose(0, 2, 1, 3, 4, 5)
        wf = wf.reshape(taps, taps, cin_eff, Cout)
    else:
        taps = 4
        cin_eff = Cin
        hin = ho_pad + taps - 1
        win = wo_pad + taps - 1
        xp = jnp.pad(x, ((0, 0),
                         (pad, hin - pad - H),
                         (pad, win - pad - W),
                         (0, 0)))
        wf = w                                            # (4, 4, Cin, Cout)

    # Lane-dense outputs: pad Cout to a multiple of 128; use a 256-wide tile when possible.
    cout_pad = _round_up(Cout, _LANE)
    cout_tile = _COUT_TILE if cout_pad % _COUT_TILE == 0 else _LANE
    n_co = cout_pad // cout_tile

    wf = jnp.pad(wf, ((0, 0), (0, 0), (0, 0), (0, cout_pad - Cout)))
    bf = jnp.pad(bias.astype(jnp.float32), (0, cout_pad - Cout)).reshape(1, cout_pad)

    n_row = ho_pad // bh
    # co slowest -> the (potentially multi-MB) weight slab is re-DMA'd n_co times total,
    # not N * n_co times.  Every grid step writes a disjoint output block -> all parallel.
    grid = (n_co, N, n_row)

    kernel = functools.partial(_conv_tap_kernel, bh=bh, wo_pad=wo_pad, taps=taps,
                               cin_eff=cin_eff, apply_leaky=apply_leaky)
    out = pl.pallas_call(
        kernel,
        out_shape=jax.ShapeDtypeStruct((N, ho_pad, wo_pad, cout_pad), compute_dtype),
        grid=grid,
        in_specs=[
            pl.BlockSpec((1, hin, win, cin_eff), lambda co, n, r: (n, 0, 0, 0)),
            pl.BlockSpec((taps, taps, cin_eff, cout_tile),
                         lambda co, n, r: (0, 0, 0, co)),
            pl.BlockSpec((1, cout_tile), lambda co, n, r: (0, co)),
        ],
        out_specs=pl.BlockSpec((1, bh, wo_pad, cout_tile),
                               lambda co, n, r: (n, r, 0, co)),
        compiler_params=pltpu.CompilerParams(
            dimension_semantics=("parallel", "parallel", "parallel"),
            vmem_limit_bytes=64 * 1024 * 1024),
    )(xp, wf, bf)
    return out[:, :ho, :wo, :Cout]


def init_params(key, input_nc, ndf=64, n_layers=3):
    """Deterministic parameter init matching NoNormDiscriminator.__init__ shapes (HWIO)."""
    kw = 4
    cfg = [(input_nc, ndf, 2)]
    nf_mult = 1
    for n in range(1, n_layers):
        nf_mult_prev = nf_mult
        nf_mult = min(2 ** n, 8)
        cfg.append((ndf * nf_mult_prev, ndf * nf_mult, 2))
    nf_mult_prev = nf_mult
    nf_mult = min(2 ** n_layers, 8)
    cfg.append((ndf * nf_mult_prev, ndf * nf_mult, 1))
    cfg.append((ndf * nf_mult, 1, 1))

    params = []
    for cin, cout, s in cfg:
        key, k1, k2 = jax.random.split(key, 3)
        fan_in = cin * kw * kw
        bound = 1.0 / np.sqrt(fan_in)
        w = jax.random.uniform(k1, (kw, kw, cin, cout), jnp.float32, -bound, bound)
        b = jax.random.uniform(k2, (cout,), jnp.float32, -bound, bound)
        params.append((w, b, s))
    return params


def no_norm_discriminator_forward(x_nchw, params, use_sigmoid=False,
                                  compute_dtype=jnp.bfloat16):
    # Layout: NCHW in -> NHWC internal -> NCHW out (matches PyTorch semantics).
    x = jnp.transpose(x_nchw, (0, 2, 3, 1))
    n_total = len(params)
    for i, (w, b, s) in enumerate(params):
        apply_leaky = i < n_total - 1  # last conv has no activation
        # TODO(synk): fuse the tiny Cout=1 head into the previous layer's epilogue inside
        # one pallas_call to save one HBM round trip of the 512-channel activation.
        x = conv2d_leaky_pallas(x, w, b, stride=s, apply_leaky=apply_leaky,
                                compute_dtype=compute_dtype)
    if use_sigmoid:
        x = jax.nn.sigmoid(x.astype(jnp.float32)).astype(x.dtype)  # optional head (glue)
    return jnp.transpose(x, (0, 3, 1, 2))


def reference_forward(x_nchw, params, use_sigmoid=False, compute_dtype=jnp.float32):
    """Pure-JAX reference (lax.conv) with matching per-layer dtype handling."""
    x = jnp.transpose(x_nchw, (0, 2, 3, 1)).astype(compute_dtype)
    n_total = len(params)
    for i, (w, b, s) in enumerate(params):
        y = jax.lax.conv_general_dilated(
            x, w.astype(compute_dtype), window_strides=(s, s),
            padding=[(2, 2), (2, 2)],
            dimension_numbers=("NHWC", "HWIO", "NHWC"),
            preferred_element_type=jnp.float32)
        y = y + b.astype(jnp.float32)
        if i < n_total - 1:
            y = jnp.where(y >= 0.0, y, 0.2 * y)
        x = y.astype(compute_dtype)
    if use_sigmoid:
        x = jax.nn.sigmoid(x.astype(jnp.float32)).astype(compute_dtype)
    return jnp.transpose(x, (0, 3, 1, 2))


if __name__ == "__main__":
    key = jax.random.PRNGKey(0)
    k_param, k_input = jax.random.split(key)

    # Small, module-consistent shapes: batch=2, input_nc=4, 16x16 spatial, ndf=8, n_layers=3.
    input_nc, ndf, n_layers = 4, 8, 3
    x = jax.random.normal(k_input, (2, input_nc, 16, 16), dtype=jnp.float32)  # NCHW
    params = init_params(k_param, input_nc, ndf=ndf, n_layers=n_layers)

    # f32 path: strict check against the XLA conv reference.
    out_f32 = jax.block_until_ready(
        no_norm_discriminator_forward(x, params, compute_dtype=jnp.float32))
    ref_f32 = jax.block_until_ready(
        reference_forward(x, params, compute_dtype=jnp.float32))
    assert out_f32.shape == ref_f32.shape == (2, 1, 5, 5), out_f32.shape
    np.testing.assert_allclose(np.asarray(out_f32), np.asarray(ref_f32),
                               rtol=2e-3, atol=2e-3)

    # bf16 path (production config: bf16 MXU inputs, f32 accumulation).
    out_bf16 = jax.block_until_ready(
        no_norm_discriminator_forward(x, params, compute_dtype=jnp.bfloat16))
    ref_bf16 = jax.block_until_ready(
        reference_forward(x, params, compute_dtype=jnp.bfloat16))
    assert out_bf16.shape == (2, 1, 5, 5), out_bf16.shape
    np.testing.assert_allclose(np.asarray(jnp.asarray(out_bf16, jnp.float32)),
                               np.asarray(jnp.asarray(ref_bf16, jnp.float32)),
                               rtol=3e-2, atol=3e-2)

    print("KERNEL_OK")
</pallas_src>

<mosaic_0001>
module attributes {stable_mosaic.version = 11 : i64} {
  func.func @_conv_tap_kernel(%arg0: i32, %arg1: i32, %arg2: i32, %arg3: memref<1x17x17x16xf32, #tpu.memory_space<vmem>>, %arg4: memref<2x2x16x128xf32, #tpu.memory_space<vmem>>, %arg5: memref<1x128xf32, #tpu.memory_space<vmem>>, %arg6: memref<1x16x16x128xf32, #tpu.memory_space<vmem>>) attributes {dimension_semantics = [#tpu.dimension_semantics<parallel>, #tpu.dimension_semantics<parallel>, #tpu.dimension_semantics<parallel>], iteration_bounds = array<i64: 1, 2, 1>, scalar_prefetch = 0 : i64, scratch_operands = 0 : i64, tpu.core_type = #tpu.core_type<tc>, window_params = [{transform_indices = @transform_0, window_bounds = array<i64: 1, 17, 17, 16>}, {transform_indices = @transform_1, window_bounds = array<i64: 2, 2, 16, 128>}, {transform_indices = @transform_2, window_bounds = array<i64: 1, 128>}, {transform_indices = @transform_3, window_bounds = array<i64: 1, 16, 16, 128>}]} {
    %c16_i32 = arith.constant 16 : i32
    %0 = arith.muli %arg2, %c16_i32 : i32
    %1 = tpu.assume_multiple %0, 16 : i32
    %cst = arith.constant 0.000000e+00 : f32
    %2 = vector.broadcast %cst : f32 to vector<256x128xf32>
    %c0_i32 = arith.constant 0 : i32
    %3 = arith.addi %1, %c0_i32 : i32
    %c0 = arith.constant 0 : index
    %4 = arith.index_cast %3 : i32 to index
    %c0_0 = arith.constant 0 : index
    %c0_1 = arith.constant 0 : index
    %5 = vector.load %arg3[%c0, %4, %c0_0, %c0_1] : memref<1x17x17x16xf32, #tpu.memory_space<vmem>>, vector<1x16x16x16xf32>
    %6 = vector.shape_cast %5 : vector<1x16x16x16xf32> to vector<16x16x16xf32>
    %7 = vector.shape_cast %6 : vector<16x16x16xf32> to vector<256x16xf32>
    %c0_2 = arith.constant 0 : index
    %c0_3 = arith.constant 0 : index
    %c0_4 = arith.constant 0 : index
    %c0_5 = arith.constant 0 : index
    %8 = vector.load %arg4[%c0_2, %c0_3, %c0_4, %c0_5] : memref<2x2x16x128xf32, #tpu.memory_space<vmem>>, vector<1x1x16x128xf32>
    %9 = vector.shape_cast %8 : vector<1x1x16x128xf32> to vector<16x128xf32>
    %cst_6 = arith.constant dense<0.000000e+00> : vector<256x128xf32>
    %10 = tpu.matmul %7, %9, %cst_6 {dimension_numbers = #tpu.dot_dimension_numbers<[1], [0], [0], [1], [0, 0, 1, 1], [], []>} : vector<256x16xf32>, vector<16x128xf32>, vector<256x128xf32> -> vector<256x128xf32>
    %11 = arith.addf %2, %10 : vector<256x128xf32>
    %c0_i32_7 = arith.constant 0 : i32
    %12 = arith.addi %1, %c0_i32_7 : i32
    %c0_8 = arith.constant 0 : index
    %13 = arith.index_cast %12 : i32 to index
    %c1 = arith.constant 1 : index
    %c0_9 = arith.constant 0 : index
    %14 = vector.load %arg3[%c0_8, %13, %c1, %c0_9] : memref<1x17x17x16xf32, #tpu.memory_space<vmem>>, vector<1x16x16x16xf32>
    %15 = vector.shape_cast %14 : vector<1x16x16x16xf32> to vector<16x16x16xf32>
    %16 = vector.shape_cast %15 : vector<16x16x16xf32> to vector<256x16xf32>
    %c0_10 = arith.constant 0 : index
    %c1_11 = arith.constant 1 : index
    %c0_12 = arith.constant 0 : index
    %c0_13 = arith.constant 0 : index
    %17 = vector.load %arg4[%c0_10, %c1_11, %c0_12, %c0_13] : memref<2x2x16x128xf32, #tpu.memory_space<vmem>>, vector<1x1x16x128xf32>
    %18 = vector.shape_cast %17 : vector<1x1x16x128xf32> to vector<16x128xf32>
    %cst_14 = arith.constant dense<0.000000e+00> : vector<256x128xf32>
    %19 = tpu.matmul %16, %18, %cst_14 {dimension_numbers = #tpu.dot_dimension_numbers<[1], [0], [0], [1], [0, 0, 1, 1], [], []>} : vector<256x16xf32>, vector<16x128xf32>, vector<256x128xf32> -> vector<256x128xf32>
    %20 = arith.addf %11, %19 : vector<256x128xf32>
    %c1_i32 = arith.constant 1 : i32
    %21 = arith.addi %1, %c1_i32 : i32
    %c0_15 = arith.constant 0 : index
    %22 = arith.index_cast %21 : i32 to index
    %c0_16 = arith.constant 0 : index
    %c0_17 = arith.constant 0 : index
    %23 = vector.load %arg3[%c0_15, %22, %c0_16, %c0_17] : memref<1x17x17x16xf32, #tpu.memory_space<vmem>>, vector<1x16x16x16xf32>
    %24 = vector.shape_cast %23 : vector<1x16x16x16xf32> to vector<16x16x16xf32>
    %25 = vector.shape_cast %24 : vector<16x16x16xf32> to vector<256x16xf32>
    %c1_18 = arith.constant 1 : index
    %c0_19 = arith.constant 0 : index
    %c0_20 = arith.constant 0 : index
    %c0_21 = arith.constant 0 : index
    %26 = vector.load %arg4[%c1_18, %c0_19, %c0_20, %c0_21] : memref<2x2x16x128xf32, #tpu.memory_space<vmem>>, vector<1x1x16x128xf32>
    %27 = vector.shape_cast %26 : vector<1x1x16x128xf32> to vector<16x128xf32>
    %cst_22 = arith.constant dense<0.000000e+00> : vector<256x128xf32>
    %28 = tpu.matmul %25, %27, %cst_22 {dimension_numbers = #tpu.dot_dimension_numbers<[1], [0], [0], [1], [0, 0, 1, 1], [], []>} : vector<256x16xf32>, vector<16x128xf32>, vector<256x128xf32> -> vector<256x128xf32>
    %29 = arith.addf %20, %28 : vector<256x128xf32>
    %c1_i32_23 = arith.constant 1 : i32
    %30 = arith.addi %1, %c1_i32_23 : i32
    %c0_24 = arith.constant 0 : index
    %31 = arith.index_cast %30 : i32 to index
    %c1_25 = arith.constant 1 : index
    %c0_26 = arith.constant 0 : index
    %32 = vector.load %arg3[%c0_24, %31, %c1_25, %c0_26] : memref<1x17x17x16xf32, #tpu.memory_space<vmem>>, vector<1x16x16x16xf32>
    %33 = vector.shape_cast %32 : vector<1x16x16x16xf32> to vector<16x16x16xf32>
    %34 = vector.shape_cast %33 : vector<16x16x16xf32> to vector<256x16xf32>
    %c1_27 = arith.constant 1 : index
    %c1_28 = arith.constant 1 : index
    %c0_29 = arith.constant 0 : index
    %c0_30 = arith.constant 0 : index
    %35 = vector.load %arg4[%c1_27, %c1_28, %c0_29, %c0_30] : memref<2x2x16x128xf32, #tpu.memory_space<vmem>>, vector<1x1x16x128xf32>
    %36 = vector.shape_cast %35 : vector<1x1x16x128xf32> to vector<16x128xf32>
    %cst_31 = arith.constant dense<0.000000e+00> : vector<256x128xf32>
    %37 = tpu.matmul %34, %36, %cst_31 {dimension_numbers = #tpu.dot_dimension_numbers<[1], [0], [0], [1], [0, 0, 1, 1], [], []>} : vector<256x16xf32>, vector<16x128xf32>, vector<256x128xf32> -> vector<256x128xf32>
    %38 = arith.addf %29, %37 : vector<256x128xf32>
    %c0_32 = arith.constant 0 : index
    %c0_33 = arith.constant 0 : index
    %39 = vector.load %arg5[%c0_32, %c0_33] : memref<1x128xf32, #tpu.memory_space<vmem>>, vector<1x128xf32>
    %40 = vector.broadcast %39 : vector<1x128xf32> to vector<256x128xf32>
    %41 = arith.addf %38, %40 : vector<256x128xf32>
    %cst_34 = arith.constant 0.000000e+00 : f32
    %42 = vector.broadcast %cst_34 : f32 to vector<256x128xf32>
    %43 = arith.cmpf oge, %41, %42 : vector<256x128xf32>
    %cst_35 = arith.constant 2.000000e-01 : f32
    %44 = vector.broadcast %cst_35 : f32 to vector<256x128xf32>
    %45 = arith.mulf %44, %41 : vector<256x128xf32>
    %46 = arith.select %43, %41, %45 : vector<256x128xi1>, vector<256x128xf32>
    %47 = vector.shape_cast %46 : vector<256x128xf32> to vector<16x16x128xf32>
    %c0_36 = arith.constant 0 : index
    %c0_37 = arith.constant 0 : index
    %c0_38 = arith.constant 0 : index
    %c0_39 = arith.constant 0 : index
    %48 = vector.load %arg6[%c0_36, %c0_37, %c0_38, %c0_39] : memref<1x16x16x128xf32, #tpu.memory_space<vmem>>, vector<1x16x16x128xf32>
    %49 = vector.shape_cast %48 : vector<1x16x16x128xf32> to vector<16x16x128xf32>
    %50 = vector.shape_cast %47 : vector<16x16x128xf32> to vector<1x16x16x128xf32>
    tpu.vector_store %arg6[%c0_36, %c0_37, %c0_38, %c0_39], %50 {strides = array<i32>} : memref<1x16x16x128xf32, #tpu.memory_space<vmem>>, vector<1x16x16x128xf32>,
    return
  }
  func.func @transform_0(%arg0: i32, %arg1: i32, %arg2: i32) -> (i32, i32, i32, i32) {
    %c0_i32 = arith.constant 0 : i32
    %c0_i32_0 = arith.constant 0 : i32
    %c0_i32_1 = arith.constant 0 : i32
    %c0_i32_2 = arith.constant 0 : i32
    return %arg1, %c0_i32, %c0_i32_0, %c0_i32_1 : i32, i32, i32, i32
  }
  func.func @transform_1(%arg0: i32, %arg1: i32, %arg2: i32) -> (i32, i32, i32, i32) {
    %c0_i32 = arith.constant 0 : i32
    %c0_i32_0 = arith.constant 0 : i32
    %c0_i32_1 = arith.constant 0 : i32
    %c0_i32_2 = arith.constant 0 : i32
    return %c0_i32, %c0_i32_0, %c0_i32_1, %arg0 : i32, i32, i32, i32
  }
  func.func @transform_2(%arg0: i32, %arg1: i32, %arg2: i32) -> (i32, i32) {
    %c0_i32 = arith.constant 0 : i32
    %c0_i32_0 = arith.constant 0 : i32
    return %c0_i32, %arg0 : i32, i32
  }
  func.func @transform_3(%arg0: i32, %arg1: i32, %arg2: i32) -> (i32, i32, i32, i32) {
    %c0_i32 = arith.constant 0 : i32
    %c0_i32_0 = arith.constant 0 : i32
    return %arg1, %arg2, %c0_i32, %arg0 : i32, i32, i32, i32
  }
}

</mosaic_0001>

<llo_original>
// kernel: tpu_custom_call.1
$region0: #{tpu_custom_call.1}
  #allocation0 [shape = 'u32[]', space=smem, size = 0x4, offset = 0x4, fixed_abs, tag = 'smem constant byte address 0x4 - core index']
  #allocation1 [shape = 'u32[144,128]{1,0:T(1,128)}', space=vmem, size = 0x12000, scoped, tag = 'internal scratch']
  %s0 = inlined_call_operand.vmem [shape: f32[2,17,17,16], index: 0, kind: input, shape index: {}]
  %s1 = inlined_call_operand.vmem [shape: f32[2,2,16,128], index: 1, kind: input, shape index: {}]
  %s2 = inlined_call_operand.vmem [shape: f32[1,128], index: 2, kind: input, shape index: {}]
  %s3 = inlined_call_operand.hbm [shape: f32[2,16,16,128], index: 3, kind: output, shape index: {}]
  %s4 = sld [smem:[#allocation0]]
  $region45: #{tpu_custom_call.1} parent=0
    _
  %s6 = ssub.s32 1, %s4
  %s7 = scalar_select 0, %s6, %s4
  $region1: #{tpu_custom_call.1} parent=0
    #allocation2 [shape = 'u8[262144]{0}', space=vmem, size = 0x40000, scoped, tag = 'output window, operand 0']
    #allocation3 [shape = 's32[2]{0}', space=sflag, size = 0x8, scoped, tag = 'scoped memory for tpu_custom_call.1']
    %8 = vsyncpa [#allocation3], 0
    %s9 = scalar_lea.sflag [#allocation3], 1
    %10 = vsyncpa %s9, 0
    loop: start=0, step=1, limit=4
    $region2: #{tpu_custom_call.1} parent=1 // loop_pre_header
      _
    $region3: #{tpu_custom_call.1} parent=1 // loop_header
      %s12 = sphi 0, %s16
      %p13 = scmp.ge.s32.totalorder %s12, 4
      %s19 = sphi 0, %s38
      %s20 = sphi 0, %s34
      %s21 = sphi 0, %s30
      %s22 = sphi 0, %s19
      %s23 = sphi 0, %s20
      %s24 = sphi 0, %s21
      %s25 = sphi 0, %s22
      %s26 = sphi 0, %s23
      %s27 = sphi 0, %s24
      %s41 = sphi 0, %s43
      %s44 = sphi 0, %s41
      %s45 = sphi 0, %s44
      %s61 = sphi 0, %s45
      %s67 = sphi 0, %s69
      %s70 = sphi 0, %s67
      %s71 = sphi 0, %s70
      %s87 = sphi 0, %s71
      %s93 = sphi 0, %s95
      %s96 = sphi 0, %s93
      %s97 = sphi 0, %s96
      %s113 = sphi 0, %s97
      %s123 = sphi 0, %s125
      %s126 = sphi 0, %s123
      %s127 = sphi 0, %s126
      %s143 = sphi 0, %s127
    $region4: #{tpu_custom_call.1} parent=1 // loop_header_branch
      %15 = sbr.rel (%p13) target = $region8
    $region5: #{tpu_custom_call.1} parent=1 // loop_body
      %s17 = ssub.s32 %s12, 1
      %s18 = ssub.s32 %s12, 2
      %s28 = sadd.s32 1, %s21
      %p29 = scmp.ge.s32.totalorder %s28, 1
      %s30 = scalar_select %p29, 0, %s28
      %s31 = sadd.s32 1, %s20
      %s32 = scalar_select %p29, %s31, %s20
      %p33 = scmp.ge.s32.totalorder %s32, 2
      %s34 = scalar_select %p33, 0, %s32
      %s35 = sadd.s32 1, %s19
      %s36 = scalar_select %p33, %s35, %s19
      %p37 = scmp.ge.s32.totalorder %s36, 1
      %s38 = scalar_select %p37, 0, %s36
      %s39 = ssub.s32 %s20, %s34
      %p40 = scmp.eq.s32.totalorder %s39, 0
      %s42 = sadd.s32 %s41, 1
      %s43 = scalar_select %p40, %s41, %s42
      %p46 = pneg %p40
      %p47 = scmp.eq.s32.totalorder %s12, 1
      %p48 = por %p46, %p47
      %p49 = scmp.ne.s32.totalorder %s41, %s44
      %p50 = scmp.eq.s32.totalorder %s12, 0
      %p51 = por %p49, %p50
      %p52 = scmp.ne.s32.totalorder %s41, %s44
      %p53 = scmp.eq.s32.totalorder %s17, 1
      %p54 = por %p52, %p53
      %p55 = scmp.ne.s32.totalorder %s44, %s45
      %p56 = scmp.eq.s32.totalorder %s17, 0
      %p57 = por %p55, %p56
      %p58 = scmp.ne.s32.totalorder %s44, %s45
      %p59 = scmp.eq.s32.totalorder %s18, 1
      %p60 = por %p58, %p59
      %p62 = scmp.ne.s32.totalorder %s45, %s61
      %p63 = scmp.eq.s32.totalorder %s18, 0
      %p64 = por %p62, %p63
      %s65 = ssub.s32 %s19, %s38
      %p66 = scmp.eq.s32.totalorder %s65, 0
      %s68 = sadd.s32 %s67, 1
      %s69 = scalar_select %p66, %s67, %s68
      %p72 = pneg %p66
      %p73 = scmp.eq.s32.totalorder %s12, 1
      %p74 = por %p72, %p73
      %p75 = scmp.ne.s32.totalorder %s67, %s70
      %p76 = scmp.eq.s32.totalorder %s12, 0
      %p77 = por %p75, %p76
      %p78 = scmp.ne.s32.totalorder %s67, %s70
      %p79 = scmp.eq.s32.totalorder %s17, 1
      %p80 = por %p78, %p79
      %p81 = scmp.ne.s32.totalorder %s70, %s71
      %p82 = scmp.eq.s32.totalorder %s17, 0
      %p83 = por %p81, %p82
      %p84 = scmp.ne.s32.totalorder %s70, %s71
      %p85 = scmp.eq.s32.totalorder %s18, 1
      %p86 = por %p84, %p85
      %p88 = scmp.ne.s32.totalorder %s71, %s87
      %p89 = scmp.eq.s32.totalorder %s18, 0
      %p90 = por %p88, %p89
      %s91 = ssub.s32 %s19, %s38
      %p92 = scmp.eq.s32.totalorder %s91, 0
      %s94 = sadd.s32 %s93, 1
      %s95 = scalar_select %p92, %s93, %s94
      %p98 = pneg %p92
      %p99 = scmp.eq.s32.totalorder %s12, 1
      %p100 = por %p98, %p99
      %p101 = scmp.ne.s32.totalorder %s93, %s96
      %p102 = scmp.eq.s32.totalorder %s12, 0
      %p103 = por %p101, %p102
      %p104 = scmp.ne.s32.totalorder %s93, %s96
      %p105 = scmp.eq.s32.totalorder %s17, 1
      %p106 = por %p104, %p105
      %p107 = scmp.ne.s32.totalorder %s96, %s97
      %p108 = scmp.eq.s32.totalorder %s17, 0
      %p109 = por %p107, %p108
      %p110 = scmp.ne.s32.totalorder %s96, %s97
      %p111 = scmp.eq.s32.totalorder %s18, 1
      %p112 = por %p110, %p111
      %p114 = scmp.ne.s32.totalorder %s97, %s113
      %p115 = scmp.eq.s32.totalorder %s18, 0
      %p116 = por %p114, %p115
      %s117 = ssub.s32 %s20, %s34
      %s118 = ssub.s32 %s21, %s30
      %s119 = sor.u32 %s117, %s118
      %s120 = ssub.s32 %s19, %s38
      %s121 = sor.u32 %s119, %s120
      %p122 = scmp.eq.s32.totalorder %s121, 0
      %s124 = sadd.s32 %s123, 1
      %s125 = scalar_select %p122, %s123, %s124
      %p128 = pneg %p122
      %p129 = scmp.eq.s32.totalorder %s12, 1
      %p130 = por %p128, %p129
      %p131 = scmp.ne.s32.totalorder %s123, %s126
      %p132 = scmp.eq.s32.totalorder %s12, 0
      %p133 = por %p131, %p132
      %p134 = scmp.ne.s32.totalorder %s123, %s126
      %p135 = scmp.eq.s32.totalorder %s17, 1
      %p136 = por %p134, %p135
      %p137 = scmp.ne.s32.totalorder %s126, %s127
      %p138 = scmp.eq.s32.totalorder %s17, 0
      %p139 = por %p137, %p138
      %p140 = scmp.ne.s32.totalorder %s126, %s127
      %p141 = scmp.eq.s32.totalorder %s18, 1
      %p142 = por %p140, %p141
      %p144 = scmp.ne.s32.totalorder %s127, %s143
      %p145 = scmp.eq.s32.totalorder %s18, 0
      %p146 = por %p144, %p145
      %p147 = scmp.le.s32.totalorder 1, %s12
      %p148 = scmp.lt.s32.totalorder %s12, 3
      %p149 = pnand %p147, %p148
      %p150 = pneg %p149
      // Predicated region
      $region9: #{tpu_custom_call.1} parent=5 // pred_check
        _
      $region10: #{tpu_custom_call.1} parent=5 // pred_check_branch
        %152 = sbr.rel (%p149) target = $region12
      $region11: #{tpu_custom_call.1} parent=5 // pred_region
        %s153 = ssub.s32 %s12, 1
        // Predicated region
        $region13: #{tpu_custom_call.1} parent=11 // pred_check
          %p154 = pneg %p83
        $region14: #{tpu_custom_call.1} parent=11 // pred_check_branch
          %156 = sbr.rel (%p154) target = $region16
        $region15: #{tpu_custom_call.1} parent=11 // pred_region
          %p157 = scmp.lt.s32.totalorder %s22, 0
          %s158 = scalar_select %p157, %s22, 0
          %s159 = smul.addr %s158, 8
          %s160 = scalar_lea.vmem %s1, %s159
        $region16: #{tpu_custom_call.1} parent=11 // pred_fallthru
          _
        // Predicated region
        $region17: #{tpu_custom_call.1} parent=11 // pred_check
          %p161 = pneg %p109
        $region18: #{tpu_custom_call.1} parent=11 // pred_check_branch
          %163 = sbr.rel (%p161) target = $region20
        $region19: #{tpu_custom_call.1} parent=11 // pred_region
          %p164 = scmp.lt.s32.totalorder %s22, 0
          %s165 = scalar_select %p164, %s22, 0
          %s166 = scalar_lea.vmem %s2, %s165
        $region20: #{tpu_custom_call.1} parent=11 // pred_fallthru
          _
      $region12: #{tpu_custom_call.1} parent=5 // pred_fallthru
        _
      %p167 = scmp.lt.s32.totalorder %s12, 2
      // Predicated region
      $region21: #{tpu_custom_call.1} parent=5 // pred_check
        %p168 = pneg %p167
      $region22: #{tpu_custom_call.1} parent=5 // pred_check_branch
        %170 = sbr.rel (%p168) target = $region24
      $region23: #{tpu_custom_call.1} parent=5 // pred_region
        // Predicated region
        $region25: #{tpu_custom_call.1} parent=23 // pred_check
          %p171 = pneg %p51
        $region26: #{tpu_custom_call.1} parent=23 // pred_check_branch
          %173 = sbr.rel (%p171) target = $region28
        $region27: #{tpu_custom_call.1} parent=23 // pred_region
          %p174 = scmp.lt.s32.totalorder %s20, 1
          %s175 = scalar_select %p174, %s20, 1
          %s176 = smul.addr %s175, 51
          %s177 = smul.addr %s176, 8
          %s178 = scalar_lea.vmem %s0, %s177
        $region28: #{tpu_custom_call.1} parent=23 // pred_fallthru
          _
      $region24: #{tpu_custom_call.1} parent=5 // pred_fallthru
        _
      %p179 = scmp.le.s32.totalorder 1, %s12
      %p180 = scmp.lt.s32.totalorder %s12, 3
      %p181 = pnand %p179, %p180
      %p182 = pneg %p181
      // Predicated region
      $region29: #{tpu_custom_call.1} parent=5 // pred_check
        _
      $region30: #{tpu_custom_call.1} parent=5 // pred_check_branch
        %184 = sbr.rel (%p181) target = $region32
      $region31: #{tpu_custom_call.1} parent=5 // pred_region
        %s185 = ssub.s32 %s12, 1
        %p186 = scmp.lt.s32.totalorder %s23, 1
        %s187 = scalar_select %p186, %s23, 1
        %s188 = smul.addr %s187, 51
        %s189 = smul.addr %s188, 8
        %s190 = scalar_lea.vmem %s0, %s189
        %p191 = pneg %p57
        %p192 = pneg %p54
        %p193 = scmp.lt.s32.totalorder %s22, 0
        %s194 = scalar_select %p193, %s22, 0
        %s195 = smul.addr %s194, 8
        %s196 = scalar_lea.vmem %s1, %s195
        %p197 = pneg %p83
        %p198 = pneg %p80
        %p199 = scmp.lt.s32.totalorder %s22, 0
        %s200 = scalar_select %p199, %s22, 0
        %s201 = scalar_lea.vmem %s2, %s200
        %p202 = pneg %p109
        %p203 = pneg %p106
        %p204 = pneg %p139
        %p205 = pneg %p136
        %s206 = sand.u32 %s126, 1
        %s207 = scalar_lea.sflag [#allocation3], %s206
        %s208 = sand.u32 %s126, 1
        %s209 = smul.addr %s208, 256
        %s210 = scalar_lea.vmem [#allocation2], %s209
        %p211 = scmp.lt.s32.totalorder %s23, 1
        %s212 = scalar_select %p211, %s23, 1
        %s213 = smul.addr %s212, 51
        %s214 = smul.addr %s213, 8
        %s215 = scalar_lea.vmem %s0, %s214
        %p216 = scmp.lt.s32.totalorder %s22, 0
        %s217 = scalar_select %p216, %s22, 0
        %s218 = smul.addr %s217, 8
        %s219 = scalar_lea.vmem %s1, %s218
        %p220 = scmp.lt.s32.totalorder %s22, 0
        %s221 = scalar_select %p220, %s22, 0
        %s222 = scalar_lea.vmem %s2, %s221
        %s223 = smul.u32 16, %s24
        %s224 = smul.u32 %s24, 16
        %s225 = smul.u32 %s224, 24
        %s226 = scalar_lea.vmem %s215, %s225
        %v227 = vld [vmem:[%s226] sm:$0xff]
        %v228 = vld [vmem:[%s226 + $0x8] sm:$0xff]
        %v229 = vld [vmem:[%s226 + $0x18] sm:$0xff]
        %v230 = vld [vmem:[%s226 + $0x20] sm:$0xff]
        %v231 = vld [vmem:[%s226 + $0x30] sm:$0xff]
        %v232 = vld [vmem:[%s226 + $0x38] sm:$0xff]
        %v233 = vld [vmem:[%s226 + $0x48] sm:$0xff]
        %v234 = vld [vmem:[%s226 + $0x50] sm:$0xff]
        %v235 = vld [vmem:[%s226 + $0x60] sm:$0xff]
        %v236 = vld [vmem:[%s226 + $0x68] sm:$0xff]
        %v237 = vld [vmem:[%s226 + $0x78] sm:$0xff]
        %v238 = vld [vmem:[%s226 + $0x80] sm:$0xff]
        %v239 = vld [vmem:[%s226 + $0x90] sm:$0xff]
        %v240 = vld [vmem:[%s226 + $0x98] sm:$0xff]
        %v241 = vld [vmem:[%s226 + $0xa8] sm:$0xff]
        %v242 = vld [vmem:[%s226 + $0xb0] sm:$0xff]
        %v243 = vld [vmem:[%s226 + $0xc0] sm:$0xff]
        %v244 = vld [vmem:[%s226 + $0xc8] sm:$0xff]
        %v245 = vld [vmem:[%s226 + $0xd8] sm:$0xff]
        %v246 = vld [vmem:[%s226 + $0xe0] sm:$0xff]
        %v247 = vld [vmem:[%s226 + $0xf0] sm:$0xff]
        %v248 = vld [vmem:[%s226 + $0xf8] sm:$0xff]
        %v249 = vld [vmem:[%s226 + $0x108] sm:$0xff]
        %v250 = vld [vmem:[%s226 + $0x110] sm:$0xff]
        %v251 = vld [vmem:[%s226 + $0x120] sm:$0xff]
        %v252 = vld [vmem:[%s226 + $0x128] sm:$0xff]
        %v253 = vld [vmem:[%s226 + $0x138] sm:$0xff]
        %v254 = vld [vmem:[%s226 + $0x140] sm:$0xff]
        %v255 = vld [vmem:[%s226 + $0x150] sm:$0xff]
        %v256 = vld [vmem:[%s226 + $0x158] sm:$0xff]
        %v257 = vld [vmem:[%s226 + $0x168] sm:$0xff]
        %v258 = vld [vmem:[%s226 + $0x170] sm:$0xff]
        %v259 = vld [vmem:[%s219] sm:$0xff]
        %v260 = vld [vmem:[%s219 + $0x8] sm:$0xff]
        %v261 = vld [vmem:[%s226 + $0x1] sm:$0xff]
        %v262 = vld [vmem:[%s226 + $0x9] sm:$0xff]
        %v263 = vld [vmem:[%s226 + $0x19] sm:$0xff]
        %v264 = vld [vmem:[%s226 + $0x21] sm:$0xff]
        %v265 = vld [vmem:[%s226 + $0x31] sm:$0xff]
        %v266 = vld [vmem:[%s226 + $0x39] sm:$0xff]
        %v267 = vld [vmem:[%s226 + $0x49] sm:$0xff]
        %v268 = vld [vmem:[%s226 + $0x51] sm:$0xff]
        %v269 = vld [vmem:[%s226 + $0x61] sm:$0xff]
        %v270 = vld [vmem:[%s226 + $0x69] sm:$0xff]
        %v271 = vld [vmem:[%s226 + $0x79] sm:$0xff]
        %v272 = vld [vmem:[%s226 + $0x81] sm:$0xff]
        %v273 = vld [vmem:[%s226 + $0x91] sm:$0xff]
        %v274 = vld [vmem:[%s226 + $0x99] sm:$0xff]
        %v275 = vld [vmem:[%s226 + $0xa9] sm:$0xff]
        %v276 = vld [vmem:[%s226 + $0xb1] sm:$0xff]
        %v277 = vld [vmem:[%s226 + $0xc1] sm:$0xff]
        %v278 = vld [vmem:[%s226 + $0xc9] sm:$0xff]
        %v279 = vld [vmem:[%s226 + $0xd9] sm:$0xff]
        %v280 = vld [vmem:[%s226 + $0xe1] sm:$0xff]
        %v281 = vld [vmem:[%s226 + $0xf1] sm:$0xff]
        %v282 = vld [vmem:[%s226 + $0xf9] sm:$0xff]
        %v283 = vld [vmem:[%s226 + $0x109] sm:$0xff]
        %v284 = vld [vmem:[%s226 + $0x111] sm:$0xff]
        %v285 = vld [vmem:[%s226 + $0x121] sm:$0xff]
        %v286 = vld [vmem:[%s226 + $0x129] sm:$0xff]
        %v287 = vld [vmem:[%s226 + $0x139] sm:$0xff]
        %v288 = vld [vmem:[%s226 + $0x141] sm:$0xff]
        %v289 = vld [vmem:[%s226 + $0x151] sm:$0xff]
        %v290 = vld [vmem:[%s226 + $0x159] sm:$0xff]
        %v291 = vld [vmem:[%s226 + $0x169] sm:$0xff]
        %v292 = vld [vmem:[%s226 + $0x171] sm:$0xff]
        %s293 = scalar_lea.vmem %s219, 16
        %v294 = vld [vmem:[%s293] sm:$0xff]
        %v295 = vld [vmem:[%s293 + $0x8] sm:$0xff]
        %vm296 = vcmask 130048
        %v298 = vsel %vm296, %v261, 0
        %v301 = vsel %vm296, %v262, 0
        %v304 = vsel %vm296, %v263, 0
        %v307 = vsel %vm296, %v264, 0
        %v310 = vsel %vm296, %v265, 0
        %v313 = vsel %vm296, %v266, 0
        %v316 = vsel %vm296, %v267, 0
        %v319 = vsel %vm296, %v268, 0
        %v322 = vsel %vm296, %v269, 0
        %v325 = vsel %vm296, %v270, 0
        %v328 = vsel %vm296, %v271, 0
        %v331 = vsel %vm296, %v272, 0
        %v334 = vsel %vm296, %v273, 0
        %v337 = vsel %vm296, %v274, 0
        %v340 = vsel %vm296, %v275, 0
        %v343 = vsel %vm296, %v276, 0
        %v346 = vsel %vm296, %v277, 0
        %v349 = vsel %vm296, %v278, 0
        %v352 = vsel %vm296, %v279, 0
        %v355 = vsel %vm296, %v280, 0
        %v358 = vsel %vm296, %v281, 0
        %v361 = vsel %vm296, %v282, 0
        %v364 = vsel %vm296, %v283, 0
        %v367 = vsel %vm296, %v284, 0
        %v370 = vsel %vm296, %v285, 0
        %v373 = vsel %vm296, %v286, 0
        %v376 = vsel %vm296, %v287, 0
        %v379 = vsel %vm296, %v288, 0
        %v382 = vsel %vm296, %v289, 0
        %v385 = vsel %vm296, %v290, 0
        %v388 = vsel %vm296, %v291, 0
        %v391 = vsel %vm296, %v292, 0
        %393 = vmatprep.subr.mxu0 0.0
        %394 = vmatpush1.msra.mxu0 0.0
        %395 = vmatprep.subr.mxu0 0.0
        %396 = vmatpush1.msra.mxu0 0.0
        %397 = vmatprep.subr.mxu0 0.0
        %398 = vmatpush1.msra.mxu0 0.0
        %399 = vmatprep.subr.mxu0 0.0
        %400 = vmatpush1.msra.mxu0 0.0
        %401 = vmatprep.subr.mxu0 0.0
        %402 = vmatpush1.msra.mxu0 0.0
        %403 = vmatprep.subr.mxu0 0.0
        %404 = vmatpush1.msra.mxu0 0.0
        %405 = vmatprep.subr.mxu0 0.0
        %406 = vmatpush1.msra.mxu0 0.0
        %407 = vmatprep.subr.mxu0 0.0
        %408 = vmatpush1.msra.mxu0 0.0
        %409 = vmatprep.subr.mxu0 0.0
        %410 = vmatpush1.msra.mxu0 0.0
        %411 = vmatprep.subr.mxu0 0.0
        %412 = vmatpush1.msra.mxu0 0.0
        %413 = vmatprep.subr.mxu0 0.0
        %414 = vmatpush1.msra.mxu0 0.0
        %415 = vmatprep.subr.mxu0 0.0
        %416 = vmatpush1.msra.mxu0 0.0
        %417 = vmatprep.subr.mxu0 0.0
        %418 = vmatpush1.msra.mxu0 0.0
        %419 = vmatprep.subr.mxu0 0.0
        %420 = vmatpush1.msra.mxu0 0.0
        %421 = vmatprep.subr.mxu0 0.0
        %422 = vmatpush1.msra.mxu0 %v295
        %423 = vmatprep.subr.mxu0 0.0
        %424 = vmatpush1.msra.mxu0 %v294
        %425 = vmatprep.subr.mxu0 0.0
        %426 = vmatpush2.msra.mxu0 0.0
        %427 = vmatprep.subr.mxu0 0.0
        %428 = vmatpush2.msra.mxu0 0.0
        %429 = vmatprep.subr.mxu0 0.0
        %430 = vmatpush2.msra.mxu0 0.0
        %431 = vmatprep.subr.mxu0 0.0
        %432 = vmatpush2.msra.mxu0 0.0
        %433 = vmatprep.subr.mxu0 0.0
        %434 = vmatpush2.msra.mxu0 0.0
        %435 = vmatprep.subr.mxu0 0.0
        %436 = vmatpush2.msra.mxu0 0.0
        %437 = vmatprep.subr.mxu0 0.0
        %438 = vmatpush2.msra.mxu0 0.0
        %439 = vmatprep.subr.mxu0 0.0
        %440 = vmatpush2.msra.mxu0 0.0
        %441 = vmatprep.subr.mxu0 0.0
        %442 = vmatpush2.msra.mxu0 0.0
        %443 = vmatprep.subr.mxu0 0.0
        %444 = vmatpush2.msra.mxu0 0.0
        %445 = vmatprep.subr.mxu0 0.0
        %446 = vmatpush2.msra.mxu0 0.0
        %447 = vmatprep.subr.mxu0 0.0
        %448 = vmatpush2.msra.mxu0 0.0
        %449 = vmatprep.subr.mxu0 0.0
        %450 = vmatpush2.msra.mxu0 0.0
        %451 = vmatprep.subr.mxu0 0.0
        %452 = vmatpush2.msra.mxu0 0.0
        %453 = vmatprep.subr.mxu0 0.0
        %454 = vmatpush2.msra.mxu0 0.0
        %455 = vmatprep.subr.mxu0 0.0
        %456 = vmatpush2.msra.mxu0 0.0
        %457 = vmatprep.mubr.f32.mxu0 0.0
        %458 = vmatmul.mubr.f32.gmra.mxu0 %v298
        %v459 = vpop.f32.mrf.mxu0
        %v460 = vadd.f32 0.0, %v459
        %v461 = vpop.f32.mrf.mxu0
        %462 = vmatprep.mubr.f32.mxu0 0.0
        %463 = vmatmul.mubr.f32.gmra.mxu0 %v301
        %v464 = vpop.f32.mrf.mxu0
        %v465 = vadd.f32 0.0, %v464
        %v466 = vpop.f32.mrf.mxu0
        %467 = vmatprep.mubr.f32.mxu0 0.0
        %468 = vmatmul.mubr.f32.gmra.mxu0 %v304
        %v469 = vpop.f32.mrf.mxu0
        %v470 = vadd.f32 0.0, %v469
        %v471 = vpop.f32.mrf.mxu0
        %472 = vmatprep.mubr.f32.mxu0 0.0
        %473 = vmatmul.mubr.f32.gmra.mxu0 %v307
        %v474 = vpop.f32.mrf.mxu0
        %v475 = vadd.f32 0.0, %v474
        %v476 = vpop.f32.mrf.mxu0
        %477 = vmatprep.mubr.f32.mxu0 0.0
        %478 = vmatmul.mubr.f32.gmra.mxu0 %v310
        %v479 = vpop.f32.mrf.mxu0
        %v480 = vadd.f32 0.0, %v479
        %v481 = vpop.f32.mrf.mxu0
        %482 = vmatprep.mubr.f32.mxu0 0.0
        %483 = vmatmul.mubr.f32.gmra.mxu0 %v313
        %v484 = vpop.f32.mrf.mxu0
        %v485 = vadd.f32 0.0, %v484
        %v486 = vpop.f32.mrf.mxu0
        %487 = vmatprep.mubr.f32.mxu0 0.0
        %488 = vmatmul.mubr.f32.gmra.mxu0 %v316
        %v489 = vpop.f32.mrf.mxu0
        %v490 = vadd.f32 0.0, %v489
        %v491 = vpop.f32.mrf.mxu0
        %492 = vmatprep.mubr.f32.mxu0 0.0
        %493 = vmatmul.mubr.f32.gmra.mxu0 %v319
        %v494 = vpop.f32.mrf.mxu0
        %v495 = vadd.f32 0.0, %v494
        %v496 = vpop.f32.mrf.mxu0
        %497 = vmatprep.mubr.f32.mxu0 0.0
        %498 = vmatmul.mubr.f32.gmra.mxu0 %v322
        %v499 = vpop.f32.mrf.mxu0
        %v500 = vadd.f32 0.0, %v499
        %v501 = vpop.f32.mrf.mxu0
        %502 = vmatprep.mubr.f32.mxu0 0.0
        %503 = vmatmul.mubr.f32.gmra.mxu0 %v325
        %v504 = vpop.f32.mrf.mxu0
        %v505 = vadd.f32 0.0, %v504
        %v506 = vpop.f32.mrf.mxu0
        %507 = vmatprep.mubr.f32.mxu0 0.0
        %508 = vmatmul.mubr.f32.gmra.mxu0 %v328
        %v509 = vpop.f32.mrf.mxu0
        %v510 = vadd.f32 0.0, %v509
        %v511 = vpop.f32.mrf.mxu0
        %512 = vmatprep.mubr.f32.mxu0 0.0
        %513 = vmatmul.mubr.f32.gmra.mxu0 %v331
        %v514 = vpop.f32.mrf.mxu0
        %v515 = vadd.f32 0.0, %v514
        %v516 = vpop.f32.mrf.mxu0
        %517 = vmatprep.mubr.f32.mxu0 0.0
        %518 = vmatmul.mubr.f32.gmra.mxu0 %v334
        %v519 = vpop.f32.mrf.mxu0
        %v520 = vadd.f32 0.0, %v519
        %v521 = vpop.f32.mrf.mxu0
        %522 = vmatprep.mubr.f32.mxu0 0.0
        %523 = vmatmul.mubr.f32.gmra.mxu0 %v337
        %v524 = vpop.f32.mrf.mxu0
        %v525 = vadd.f32 0.0, %v524
        %v526 = vpop.f32.mrf.mxu0
        %527 = vmatprep.mubr.f32.mxu0 0.0
        %528 = vmatmul.mubr.f32.gmra.mxu0 %v340
        %v529 = vpop.f32.mrf.mxu0
        %v530 = vadd.f32 0.0, %v529
        %v531 = vpop.f32.mrf.mxu0
        %532 = vmatprep.mubr.f32.mxu0 0.0
        %533 = vmatmul.mubr.f32.gmra.mxu0 %v343
        %v534 = vpop.f32.mrf.mxu0
        %v535 = vadd.f32 0.0, %v534
        %v536 = vpop.f32.mrf.mxu0
        %537 = vmatprep.mubr.f32.mxu0 0.0
        %538 = vmatmul.mubr.f32.gmra.mxu0 %v346
        %v539 = vpop.f32.mrf.mxu0
        %v540 = vadd.f32 0.0, %v539
        %v541 = vpop.f32.mrf.mxu0
        %542 = vmatprep.mubr.f32.mxu0 0.0
        %543 = vmatmul.mubr.f32.gmra.mxu0 %v349
        %v544 = vpop.f32.mrf.mxu0
        %v545 = vadd.f32 0.0, %v544
        %v546 = vpop.f32.mrf.mxu0
        %547 = vmatprep.mubr.f32.mxu0 0.0
        %548 = vmatmul.mubr.f32.gmra.mxu0 %v352
        %v549 = vpop.f32.mrf.mxu0
        %v550 = vadd.f32 0.0, %v549
        %v551 = vpop.f32.mrf.mxu0
        %552 = vmatprep.mubr.f32.mxu0 0.0
        %553 = vmatmul.mubr.f32.gmra.mxu0 %v355
        %v554 = vpop.f32.mrf.mxu0
        %v555 = vadd.f32 0.0, %v554
        %v556 = vpop.f32.mrf.mxu0
        %557 = vmatprep.mubr.f32.mxu0 0.0
        %558 = vmatmul.mubr.f32.gmra.mxu0 %v358
        %v559 = vpop.f32.mrf.mxu0
        %v560 = vadd.f32 0.0, %v559
        %v561 = vpop.f32.mrf.mxu0
        %562 = vmatprep.mubr.f32.mxu0 0.0
        %563 = vmatmul.mubr.f32.gmra.mxu0 %v361
        %v564 = vpop.f32.mrf.mxu0
        %v565 = vadd.f32 0.0, %v564
        %v566 = vpop.f32.mrf.mxu0
        %567 = vmatprep.mubr.f32.mxu0 0.0
        %568 = vmatmul.mubr.f32.gmra.mxu0 %v364
        %v569 = vpop.f32.mrf.mxu0
        %v570 = vadd.f32 0.0, %v569
        %v571 = vpop.f32.mrf.mxu0
        %572 = vmatprep.mubr.f32.mxu0 0.0
        %573 = vmatmul.mubr.f32.gmra.mxu0 %v367
        %v574 = vpop.f32.mrf.mxu0
        %v575 = vadd.f32 0.0, %v574
        %v576 = vpop.f32.mrf.mxu0
        %577 = vmatprep.mubr.f32.mxu0 0.0
        %578 = vmatmul.mubr.f32.gmra.mxu0 %v370
        %v579 = vpop.f32.mrf.mxu0
        %v580 = vadd.f32 0.0, %v579
        %v581 = vpop.f32.mrf.mxu0
        %582 = vmatprep.mubr.f32.mxu0 0.0
        %583 = vmatmul.mubr.f32.gmra.mxu0 %v373
        %v584 = vpop.f32.mrf.mxu0
        %v585 = vadd.f32 0.0, %v584
        %v586 = vpop.f32.mrf.mxu0
        %587 = vmatprep.mubr.f32.mxu0 0.0
        %588 = vmatmul.mubr.f32.gmra.mxu0 %v376
        %v589 = vpop.f32.mrf.mxu0
        %v590 = vadd.f32 0.0, %v589
        %v591 = vpop.f32.mrf.mxu0
        %592 = vmatprep.mubr.f32.mxu0 0.0
        %593 = vmatmul.mubr.f32.gmra.mxu0 %v379
        %v594 = vpop.f32.mrf.mxu0
        %v595 = vadd.f32 0.0, %v594
        %v596 = vpop.f32.mrf.mxu0
        %597 = vmatprep.mubr.f32.mxu0 0.0
        %598 = vmatmul.mubr.f32.gmra.mxu0 %v382
        %v599 = vpop.f32.mrf.mxu0
        %v600 = vadd.f32 0.0, %v599
        %v601 = vpop.f32.mrf.mxu0
        %602 = vmatprep.mubr.f32.mxu0 0.0
        %603 = vmatmul.mubr.f32.gmra.mxu0 %v385
        %v604 = vpop.f32.mrf.mxu0
        %v605 = vadd.f32 0.0, %v604
        %v606 = vpop.f32.mrf.mxu0
        %607 = vmatprep.mubr.f32.mxu0 0.0
        %608 = vmatmul.mubr.f32.gmra.mxu0 %v388
        %v609 = vpop.f32.mrf.mxu0
        %v610 = vadd.f32 0.0, %v609
        %v611 = vpop.f32.mrf.mxu0
        %612 = vmatprep.mubr.f32.mxu0 0.0
        %613 = vmatmul.mubr.f32.gmra.mxu0 %v391
        %v614 = vpop.f32.mrf.mxu0
        %v615 = vadd.f32 0.0, %v614
        %v616 = vpop.f32.mrf.mxu0
        %617 = vdwg.mxu0
        %v619 = vsel %vm296, %v227, 0
        %v622 = vsel %vm296, %v228, 0
        %v625 = vsel %vm296, %v229, 0
        %v628 = vsel %vm296, %v230, 0
        %v631 = vsel %vm296, %v231, 0
        %v634 = vsel %vm296, %v232, 0
        %v637 = vsel %vm296, %v233, 0
        %v640 = vsel %vm296, %v234, 0
        %v643 = vsel %vm296, %v235, 0
        %v646 = vsel %vm296, %v236, 0
        %v649 = vsel %vm296, %v237, 0
        %v652 = vsel %vm296, %v238, 0
        %v655 = vsel %vm296, %v239, 0
        %v658 = vsel %vm296, %v240, 0
        %v661 = vsel %vm296, %v241, 0
        %v664 = vsel %vm296, %v242, 0
        %v667 = vsel %vm296, %v243, 0
        %v670 = vsel %vm296, %v244, 0
        %v673 = vsel %vm296, %v245, 0
        %v676 = vsel %vm296, %v246, 0
        %v679 = vsel %vm296, %v247, 0
        %v682 = vsel %vm296, %v248, 0
        %v685 = vsel %vm296, %v249, 0
        %v688 = vsel %vm296, %v250, 0
        %v691 = vsel %vm296, %v251, 0
        %v694 = vsel %vm296, %v252, 0
        %v697 = vsel %vm296, %v253, 0
        %v700 = vsel %vm296, %v254, 0
        %v703 = vsel %vm296, %v255, 0
        %v706 = vsel %vm296, %v256, 0
        %v709 = vsel %vm296, %v257, 0
        %v712 = vsel %vm296, %v258, 0
        %714 = vmatprep.subr.mxu0 0.0
        %715 = vmatpush1.msra.mxu0 0.0
        %716 = vmatprep.subr.mxu0 0.0
        %717 = vmatpush1.msra.mxu0 0.0
        %718 = vmatprep.subr.mxu0 0.0
        %719 = vmatpush1.msra.mxu0 0.0
        %720 = vmatprep.subr.mxu0 0.0
        %721 = vmatpush1.msra.mxu0 0.0
        %722 = vmatprep.subr.mxu0 0.0
        %723 = vmatpush1.msra.mxu0 0.0
        %724 = vmatprep.subr.mxu0 0.0
        %725 = vmatpush1.msra.mxu0 0.0
        %726 = vmatprep.subr.mxu0 0.0
        %727 = vmatpush1.msra.mxu0 0.0
        %728 = vmatprep.subr.mxu0 0.0
        %729 = vmatpush1.msra.mxu0 0.0
        %730 = vmatprep.subr.mxu0 0.0
        %731 = vmatpush1.msra.mxu0 0.0
        %732 = vmatprep.subr.mxu0 0.0
        %733 = vmatpush1.msra.mxu0 0.0
        %734 = vmatprep.subr.mxu0 0.0
        %735 = vmatpush1.msra.mxu0 0.0
        %736 = vmatprep.subr.mxu0 0.0
        %737 = vmatpush1.msra.mxu0 0.0
        %738 = vmatprep.subr.mxu0 0.0
        %739 = vmatpush1.msra.mxu0 0.0
        %740 = vmatprep.subr.mxu0 0.0
        %741 = vmatpush1.msra.mxu0 0.0
        %742 = vmatprep.subr.mxu0 0.0
        %743 = vmatpush1.msra.mxu0 %v260
        %744 = vmatprep.subr.mxu0 0.0
        %745 = vmatpush1.msra.mxu0 %v259
        %746 = vmatprep.subr.mxu0 0.0
        %747 = vmatpush2.msra.mxu0 0.0
        %748 = vmatprep.subr.mxu0 0.0
        %749 = vmatpush2.msra.mxu0 0.0
        %750 = vmatprep.subr.mxu0 0.0
        %751 = vmatpush2.msra.mxu0 0.0
        %752 = vmatprep.subr.mxu0 0.0
        %753 = vmatpush2.msra.mxu0 0.0
        %754 = vmatprep.subr.mxu0 0.0
        %755 = vmatpush2.msra.mxu0 0.0
        %756 = vmatprep.subr.mxu0 0.0
        %757 = vmatpush2.msra.mxu0 0.0
        %758 = vmatprep.subr.mxu0 0.0
        %759 = vmatpush2.msra.mxu0 0.0
        %760 = vmatprep.subr.mxu0 0.0
        %761 = vmatpush2.msra.mxu0 0.0
        %762 = vmatprep.subr.mxu0 0.0
        %763 = vmatpush2.msra.mxu0 0.0
        %764 = vmatprep.subr.mxu0 0.0
        %765 = vmatpush2.msra.mxu0 0.0
        %766 = vmatprep.subr.mxu0 0.0
        %767 = vmatpush2.msra.mxu0 0.0
        %768 = vmatprep.subr.mxu0 0.0
        %769 = vmatpush2.msra.mxu0 0.0
        %770 = vmatprep.subr.mxu0 0.0
        %771 = vmatpush2.msra.mxu0 0.0
        %772 = vmatprep.subr.mxu0 0.0
        %773 = vmatpush2.msra.mxu0 0.0
        %774 = vmatprep.subr.mxu0 0.0
        %775 = vmatpush2.msra.mxu0 0.0
        %776 = vmatprep.subr.mxu0 0.0
        %777 = vmatpush2.msra.mxu0 0.0
        %778 = vmatprep.mubr.f32.mxu0 0.0
        %779 = vmatmul.mubr.f32.gmra.mxu0 %v619
        %v780 = vpop.f32.mrf.mxu0
        %v781 = vadd.f32 %v460, %v780
        %v782 = vpop.f32.mrf.mxu0
        %783 = vmatprep.mubr.f32.mxu0 0.0
        %784 = vmatmul.mubr.f32.gmra.mxu0 %v622
        %v785 = vpop.f32.mrf.mxu0
        %v786 = vadd.f32 %v465, %v785
        %v787 = vpop.f32.mrf.mxu0
        %788 = vmatprep.mubr.f32.mxu0 0.0
        %789 = vmatmul.mubr.f32.gmra.mxu0 %v625
        %v790 = vpop.f32.mrf.mxu0
        %v791 = vadd.f32 %v470, %v790
        %v792 = vpop.f32.mrf.mxu0
        %793 = vmatprep.mubr.f32.mxu0 0.0
        %794 = vmatmul.mubr.f32.gmra.mxu0 %v628
        %v795 = vpop.f32.mrf.mxu0
        %v796 = vadd.f32 %v475, %v795
        %v797 = vpop.f32.mrf.mxu0
        %798 = vmatprep.mubr.f32.mxu0 0.0
        %799 = vmatmul.mubr.f32.gmra.mxu0 %v631
        %v800 = vpop.f32.mrf.mxu0
        %v801 = vadd.f32 %v480, %v800
        %v802 = vpop.f32.mrf.mxu0
        %803 = vmatprep.mubr.f32.mxu0 0.0
        %804 = vmatmul.mubr.f32.gmra.mxu0 %v634
        %v805 = vpop.f32.mrf.mxu0
        %v806 = vadd.f32 %v485, %v805
        %v807 = vpop.f32.mrf.mxu0
        %808 = vmatprep.mubr.f32.mxu0 0.0
        %809 = vmatmul.mubr.f32.gmra.mxu0 %v637
        %v810 = vpop.f32.mrf.mxu0
        %v811 = vadd.f32 %v490, %v810
        %v812 = vpop.f32.mrf.mxu0
        %813 = vmatprep.mubr.f32.mxu0 0.0
        %814 = vmatmul.mubr.f32.gmra.mxu0 %v640
        %v815 = vpop.f32.mrf.mxu0
        %v816 = vadd.f32 %v495, %v815
        %v817 = vpop.f32.mrf.mxu0
        %818 = vmatprep.mubr.f32.mxu0 0.0
        %819 = vmatmul.mubr.f32.gmra.mxu0 %v643
        %v820 = vpop.f32.mrf.mxu0
        %v821 = vadd.f32 %v500, %v820
        %v822 = vpop.f32.mrf.mxu0
        %823 = vmatprep.mubr.f32.mxu0 0.0
        %824 = vmatmul.mubr.f32.gmra.mxu0 %v646
        %v825 = vpop.f32.mrf.mxu0
        %v826 = vadd.f32 %v505, %v825
        %v827 = vpop.f32.mrf.mxu0
        %828 = vmatprep.mubr.f32.mxu0 0.0
        %829 = vmatmul.mubr.f32.gmra.mxu0 %v649
        %v830 = vpop.f32.mrf.mxu0
        %v831 = vadd.f32 %v510, %v830
        %v832 = vpop.f32.mrf.mxu0
        %833 = vmatprep.mubr.f32.mxu0 0.0
        %834 = vmatmul.mubr.f32.gmra.mxu0 %v652
        %v835 = vpop.f32.mrf.mxu0
        %v836 = vadd.f32 %v515, %v835
        %v837 = vpop.f32.mrf.mxu0
        %838 = vmatprep.mubr.f32.mxu0 0.0
        %839 = vmatmul.mubr.f32.gmra.mxu0 %v655
        %v840 = vpop.f32.mrf.mxu0
        %v841 = vadd.f32 %v520, %v840
        %v842 = vpop.f32.mrf.mxu0
        %843 = vmatprep.mubr.f32.mxu0 0.0
        %844 = vmatmul.mubr.f32.gmra.mxu0 %v658
        %v845 = vpop.f32.mrf.mxu0
        %v846 = vadd.f32 %v525, %v845
        %v847 = vpop.f32.mrf.mxu0
        %848 = vmatprep.mubr.f32.mxu0 0.0
        %849 = vmatmul.mubr.f32.gmra.mxu0 %v661
        %v850 = vpop.f32.mrf.mxu0
        %v851 = vadd.f32 %v530, %v850
        %v852 = vpop.f32.mrf.mxu0
        %853 = vmatprep.mubr.f32.mxu0 0.0
        %854 = vmatmul.mubr.f32.gmra.mxu0 %v664
        %v855 = vpop.f32.mrf.mxu0
        %v856 = vadd.f32 %v535, %v855
        %v857 = vpop.f32.mrf.mxu0
        %858 = vmatprep.mubr.f32.mxu0 0.0
        %859 = vmatmul.mubr.f32.gmra.mxu0 %v667
        %v860 = vpop.f32.mrf.mxu0
        %v861 = vadd.f32 %v540, %v860
        %v862 = vpop.f32.mrf.mxu0
        %863 = vmatprep.mubr.f32.mxu0 0.0
        %864 = vmatmul.mubr.f32.gmra.mxu0 %v670
        %v865 = vpop.f32.mrf.mxu0
        %v866 = vadd.f32 %v545, %v865
        %v867 = vpop.f32.mrf.mxu0
        %868 = vmatprep.mubr.f32.mxu0 0.0
        %869 = vmatmul.mubr.f32.gmra.mxu0 %v673
        %v870 = vpop.f32.mrf.mxu0
        %v871 = vadd.f32 %v550, %v870
        %v872 = vpop.f32.mrf.mxu0
        %873 = vmatprep.mubr.f32.mxu0 0.0
        %874 = vmatmul.mubr.f32.gmra.mxu0 %v676
        %v875 = vpop.f32.mrf.mxu0
        %v876 = vadd.f32 %v555, %v875
        %v877 = vpop.f32.mrf.mxu0
        %878 = vmatprep.mubr.f32.mxu0 0.0
        %879 = vmatmul.mubr.f32.gmra.mxu0 %v679
        %v880 = vpop.f32.mrf.mxu0
        %v881 = vadd.f32 %v560, %v880
        %v882 = vpop.f32.mrf.mxu0
        %883 = vmatprep.mubr.f32.mxu0 0.0
        %884 = vmatmul.mubr.f32.gmra.mxu0 %v682
        %v885 = vpop.f32.mrf.mxu0
        %v886 = vadd.f32 %v565, %v885
        %v887 = vpop.f32.mrf.mxu0
        %888 = vmatprep.mubr.f32.mxu0 0.0
        %889 = vmatmul.mubr.f32.gmra.mxu0 %v685
        %v890 = vpop.f32.mrf.mxu0
        %v891 = vadd.f32 %v570, %v890
        %v892 = vpop.f32.mrf.mxu0
        %893 = vmatprep.mubr.f32.mxu0 0.0
        %894 = vmatmul.mubr.f32.gmra.mxu0 %v688
        %v895 = vpop.f32.mrf.mxu0
        %v896 = vadd.f32 %v575, %v895
        %v897 = vpop.f32.mrf.mxu0
        %898 = vmatprep.mubr.f32.mxu0 0.0
        %899 = vmatmul.mubr.f32.gmra.mxu0 %v691
        %v900 = vpop.f32.mrf.mxu0
        %v901 = vadd.f32 %v580, %v900
        %v902 = vpop.f32.mrf.mxu0
        %903 = vmatprep.mubr.f32.mxu0 0.0
        %904 = vmatmul.mubr.f32.gmra.mxu0 %v694
        %v905 = vpop.f32.mrf.mxu0
        %v906 = vadd.f32 %v585, %v905
        %v907 = vpop.f32.mrf.mxu0
        %908 = vmatprep.mubr.f32.mxu0 0.0
        %909 = vmatmul.mubr.f32.gmra.mxu0 %v697
        %v910 = vpop.f32.mrf.mxu0
        %v911 = vadd.f32 %v590, %v910
        %v912 = vpop.f32.mrf.mxu0
        %913 = vmatprep.mubr.f32.mxu0 0.0
        %914 = vmatmul.mubr.f32.gmra.mxu0 %v700
        %v915 = vpop.f32.mrf.mxu0
        %v916 = vadd.f32 %v595, %v915
        %v917 = vpop.f32.mrf.mxu0
        %918 = vmatprep.mubr.f32.mxu0 0.0
        %919 = vmatmul.mubr.f32.gmra.mxu0 %v703
        %v920 = vpop.f32.mrf.mxu0
        %v921 = vadd.f32 %v600, %v920
        %v922 = vpop.f32.mrf.mxu0
        %923 = vmatprep.mubr.f32.mxu0 0.0
        %924 = vmatmul.mubr.f32.gmra.mxu0 %v706
        %v925 = vpop.f32.mrf.mxu0
        %v926 = vadd.f32 %v605, %v925
        %v927 = vpop.f32.mrf.mxu0
        %928 = vmatprep.mubr.f32.mxu0 0.0
        %929 = vmatmul.mubr.f32.gmra.mxu0 %v709
        %v930 = vpop.f32.mrf.mxu0
        %v931 = vadd.f32 %v610, %v930
        %v932 = vpop.f32.mrf.mxu0
        %933 = vmatprep.mubr.f32.mxu0 0.0
        %934 = vmatmul.mubr.f32.gmra.mxu0 %v712
        %v935 = vpop.f32.mrf.mxu0
        %v936 = vadd.f32 %v615, %v935
        %v937 = vpop.f32.mrf.mxu0
        %938 = vdwg.mxu0
        %s939 = sadd.s32 %s224, 1
        %s940 = smul.u32 %s939, 24
        %s941 = scalar_lea.vmem %s215, %s940
        %v942 = vld [vmem:[%s941] sm:$0xff]
        %v943 = vld [vmem:[%s941 + $0x8] sm:$0xff]
        %v944 = vld [vmem:[%s941 + $0x18] sm:$0xff]
        %v945 = vld [vmem:[%s941 + $0x20] sm:$0xff]
        %v946 = vld [vmem:[%s941 + $0x30] sm:$0xff]
        %v947 = vld [vmem:[%s941 + $0x38] sm:$0xff]
        %v948 = vld [vmem:[%s941 + $0x48] sm:$0xff]
        %v949 = vld [vmem:[%s941 + $0x50] sm:$0xff]
        %v950 = vld [vmem:[%s941 + $0x60] sm:$0xff]
        %v951 = vld [vmem:[%s941 + $0x68] sm:$0xff]
        %v952 = vld [vmem:[%s941 + $0x78] sm:$0xff]
        %v953 = vld [vmem:[%s941 + $0x80] sm:$0xff]
        %v954 = vld [vmem:[%s941 + $0x90] sm:$0xff]
        %v955 = vld [vmem:[%s941 + $0x98] sm:$0xff]
        %v956 = vld [vmem:[%s941 + $0xa8] sm:$0xff]
        %v957 = vld [vmem:[%s941 + $0xb0] sm:$0xff]
        %v958 = vld [vmem:[%s941 + $0xc0] sm:$0xff]
        %v959 = vld [vmem:[%s941 + $0xc8] sm:$0xff]
        %v960 = vld [vmem:[%s941 + $0xd8] sm:$0xff]
        %v961 = vld [vmem:[%s941 + $0xe0] sm:$0xff]
        %v962 = vld [vmem:[%s941 + $0xf0] sm:$0xff]
        %v963 = vld [vmem:[%s941 + $0xf8] sm:$0xff]
        %v964 = vld [vmem:[%s941 + $0x108] sm:$0xff]
        %v965 = vld [vmem:[%s941 + $0x110] sm:$0xff]
        %v966 = vld [vmem:[%s941 + $0x120] sm:$0xff]
        %v967 = vld [vmem:[%s941 + $0x128] sm:$0xff]
        %v968 = vld [vmem:[%s941 + $0x138] sm:$0xff]
        %v969 = vld [vmem:[%s941 + $0x140] sm:$0xff]
        %v970 = vld [vmem:[%s941 + $0x150] sm:$0xff]
        %v971 = vld [vmem:[%s941 + $0x158] sm:$0xff]
        %v972 = vld [vmem:[%s941 + $0x168] sm:$0xff]
        %v973 = vld [vmem:[%s941 + $0x170] sm:$0xff]
        %s974 = scalar_lea.vmem %s219, 32
        %v975 = vld [vmem:[%s974] sm:$0xff]
        %v976 = vld [vmem:[%s974 + $0x8] sm:$0xff]
        %v978 = vsel %vm296, %v942, 0
        %v981 = vsel %vm296, %v943, 0
        %v984 = vsel %vm296, %v944, 0
        %v987 = vsel %vm296, %v945, 0
        %v990 = vsel %vm296, %v946, 0
        %v993 = vsel %vm296, %v947, 0
        %v996 = vsel %vm296, %v948, 0
        %v999 = vsel %vm296, %v949, 0
        %v1002 = vsel %vm296, %v950, 0
        %v1005 = vsel %vm296, %v951, 0
        %v1008 = vsel %vm296, %v952, 0
        %v1011 = vsel %vm296, %v953, 0
        %v1014 = vsel %vm296, %v954, 0
        %v1017 = vsel %vm296, %v955, 0
        %v1020 = vsel %vm296, %v956, 0
        %v1023 = vsel %vm296, %v957, 0
        %v1026 = vsel %vm296, %v958, 0
        %v1029 = vsel %vm296, %v959, 0
        %v1032 = vsel %vm296, %v960, 0
        %v1035 = vsel %vm296, %v961, 0
        %v1038 = vsel %vm296, %v962, 0
        %v1041 = vsel %vm296, %v963, 0
        %v1044 = vsel %vm296, %v964, 0
        %v1047 = vsel %vm296, %v965, 0
        %v1050 = vsel %vm296, %v966, 0
        %v1053 = vsel %vm296, %v967, 0
        %v1056 = vsel %vm296, %v968, 0
        %v1059 = vsel %vm296, %v969, 0
        %v1062 = vsel %vm296, %v970, 0
        %v1065 = vsel %vm296, %v971, 0
        %v1068 = vsel %vm296, %v972, 0
        %v1071 = vsel %vm296, %v973, 0
        %1073 = vmatprep.subr.mxu0 0.0
        %1074 = vmatpush1.msra.mxu0 0.0
        %1075 = vmatprep.subr.mxu0 0.0
        %1076 = vmatpush1.msra.mxu0 0.0
        %1077 = vmatprep.subr.mxu0 0.0
        %1078 = vmatpush1.msra.mxu0 0.0
        %1079 = vmatprep.subr.mxu0 0.0
        %1080 = vmatpush1.msra.mxu0 0.0
        %1081 = vmatprep.subr.mxu0 0.0
        %1082 = vmatpush1.msra.mxu0 0.0
        %1083 = vmatprep.subr.mxu0 0.0
        %1084 = vmatpush1.msra.mxu0 0.0
        %1085 = vmatprep.subr.mxu0 0.0
        %1086 = vmatpush1.msra.mxu0 0.0
        %1087 = vmatprep.subr.mxu0 0.0
        %1088 = vmatpush1.msra.mxu0 0.0
        %1089 = vmatprep.subr.mxu0 0.0
        %1090 = vmatpush1.msra.mxu0 0.0
        %1091 = vmatprep.subr.mxu0 0.0
        %1092 = vmatpush1.msra.mxu0 0.0
        %1093 = vmatprep.subr.mxu0 0.0
        %1094 = vmatpush1.msra.mxu0 0.0
        %1095 = vmatprep.subr.mxu0 0.0
        %1096 = vmatpush1.msra.mxu0 0.0
        %1097 = vmatprep.subr.mxu0 0.0
        %1098 = vmatpush1.msra.mxu0 0.0
        %1099 = vmatprep.subr.mxu0 0.0
        %1100 = vmatpush1.msra.mxu0 0.0
        %1101 = vmatprep.subr.mxu0 0.0
        %1102 = vmatpush1.msra.mxu0 %v976
        %1103 = vmatprep.subr.mxu0 0.0
        %1104 = vmatpush1.msra.mxu0 %v975
        %1105 = vmatprep.subr.mxu0 0.0
        %1106 = vmatpush2.msra.mxu0 0.0
        %1107 = vmatprep.subr.mxu0 0.0
        %1108 = vmatpush2.msra.mxu0 0.0
        %1109 = vmatprep.subr.mxu0 0.0
        %1110 = vmatpush2.msra.mxu0 0.0
        %1111 = vmatprep.subr.mxu0 0.0
        %1112 = vmatpush2.msra.mxu0 0.0
        %1113 = vmatprep.subr.mxu0 0.0
        %1114 = vmatpush2.msra.mxu0 0.0
        %1115 = vmatprep.subr.mxu0 0.0
        %1116 = vmatpush2.msra.mxu0 0.0
        %1117 = vmatprep.subr.mxu0 0.0
        %1118 = vmatpush2.msra.mxu0 0.0
        %1119 = vmatprep.subr.mxu0 0.0
        %1120 = vmatpush2.msra.mxu0 0.0
        %1121 = vmatprep.subr.mxu0 0.0
        %1122 = vmatpush2.msra.mxu0 0.0
        %1123 = vmatprep.subr.mxu0 0.0
        %1124 = vmatpush2.msra.mxu0 0.0
        %1125 = vmatprep.subr.mxu0 0.0
        %1126 = vmatpush2.msra.mxu0 0.0
        %1127 = vmatprep.subr.mxu0 0.0
        %1128 = vmatpush2.msra.mxu0 0.0
        %1129 = vmatprep.subr.mxu0 0.0
        %1130 = vmatpush2.msra.mxu0 0.0
        %1131 = vmatprep.subr.mxu0 0.0
        %1132 = vmatpush2.msra.mxu0 0.0
        %1133 = vmatprep.subr.mxu0 0.0
        %1134 = vmatpush2.msra.mxu0 0.0
        %1135 = vmatprep.subr.mxu0 0.0
        %1136 = vmatpush2.msra.mxu0 0.0
        %1137 = vmatprep.mubr.f32.mxu0 0.0
        %1138 = vmatmul.mubr.f32.gmra.mxu0 %v978
        %v1139 = vpop.f32.mrf.mxu0
        %v1140 = vadd.f32 0.0, %v1139
        %v1141 = vpop.f32.mrf.mxu0
        %1142 = vmatprep.mubr.f32.mxu0 0.0
        %1143 = vmatmul.mubr.f32.gmra.mxu0 %v981
        %v1144 = vpop.f32.mrf.mxu0
        %v1145 = vadd.f32 0.0, %v1144
        %v1146 = vpop.f32.mrf.mxu0
        %1147 = vmatprep.mubr.f32.mxu0 0.0
        %1148 = vmatmul.mubr.f32.gmra.mxu0 %v984
        %v1149 = vpop.f32.mrf.mxu0
        %v1150 = vadd.f32 0.0, %v1149
        %v1151 = vpop.f32.mrf.mxu0
        %1152 = vmatprep.mubr.f32.mxu0 0.0
        %1153 = vmatmul.mubr.f32.gmra.mxu0 %v987
        %v1154 = vpop.f32.mrf.mxu0
        %v1155 = vadd.f32 0.0, %v1154
        %v1156 = vpop.f32.mrf.mxu0
        %1157 = vmatprep.mubr.f32.mxu0 0.0
        %1158 = vmatmul.mubr.f32.gmra.mxu0 %v990
        %v1159 = vpop.f32.mrf.mxu0
        %v1160 = vadd.f32 0.0, %v1159
        %v1161 = vpop.f32.mrf.mxu0
        %1162 = vmatprep.mubr.f32.mxu0 0.0
        %1163 = vmatmul.mubr.f32.gmra.mxu0 %v993
        %v1164 = vpop.f32.mrf.mxu0
        %v1165 = vadd.f32 0.0, %v1164
        %v1166 = vpop.f32.mrf.mxu0
        %1167 = vmatprep.mubr.f32.mxu0 0.0
        %1168 = vmatmul.mubr.f32.gmra.mxu0 %v996
        %v1169 = vpop.f32.mrf.mxu0
        %v1170 = vadd.f32 0.0, %v1169
        %v1171 = vpop.f32.mrf.mxu0
        %1172 = vmatprep.mubr.f32.mxu0 0.0
        %1173 = vmatmul.mubr.f32.gmra.mxu0 %v999
        %v1174 = vpop.f32.mrf.mxu0
        %v1175 = vadd.f32 0.0, %v1174
        %v1176 = vpop.f32.mrf.mxu0
        %1177 = vmatprep.mubr.f32.mxu0 0.0
        %1178 = vmatmul.mubr.f32.gmra.mxu0 %v1002
        %v1179 = vpop.f32.mrf.mxu0
        %v1180 = vadd.f32 0.0, %v1179
        %v1181 = vpop.f32.mrf.mxu0
        %1182 = vmatprep.mubr.f32.mxu0 0.0
        %1183 = vmatmul.mubr.f32.gmra.mxu0 %v1005
        %v1184 = vpop.f32.mrf.mxu0
        %v1185 = vadd.f32 0.0, %v1184
        %v1186 = vpop.f32.mrf.mxu0
        %1187 = vmatprep.mubr.f32.mxu0 0.0
        %1188 = vmatmul.mubr.f32.gmra.mxu0 %v1008
        %v1189 = vpop.f32.mrf.mxu0
        %v1190 = vadd.f32 0.0, %v1189
        %v1191 = vpop.f32.mrf.mxu0
        %1192 = vmatprep.mubr.f32.mxu0 0.0
        %1193 = vmatmul.mubr.f32.gmra.mxu0 %v1011
        %v1194 = vpop.f32.mrf.mxu0
        %v1195 = vadd.f32 0.0, %v1194
        %v1196 = vpop.f32.mrf.mxu0
        %1197 = vmatprep.mubr.f32.mxu0 0.0
        %1198 = vmatmul.mubr.f32.gmra.mxu0 %v1014
        %v1199 = vpop.f32.mrf.mxu0
        %v1200 = vadd.f32 0.0, %v1199
        %v1201 = vpop.f32.mrf.mxu0
        %1202 = vmatprep.mubr.f32.mxu0 0.0
        %1203 = vmatmul.mubr.f32.gmra.mxu0 %v1017
        %v1204 = vpop.f32.mrf.mxu0
        %v1205 = vadd.f32 0.0, %v1204
        %v1206 = vpop.f32.mrf.mxu0
        %1207 = vmatprep.mubr.f32.mxu0 0.0
        %1208 = vmatmul.mubr.f32.gmra.mxu0 %v1020
        %v1209 = vpop.f32.mrf.mxu0
        %v1210 = vadd.f32 0.0, %v1209
        %v1211 = vpop.f32.mrf.mxu0
        %1212 = vmatprep.mubr.f32.mxu0 0.0
        %1213 = vmatmul.mubr.f32.gmra.mxu0 %v1023
        %v1214 = vpop.f32.mrf.mxu0
        %v1215 = vadd.f32 0.0, %v1214
        %v1216 = vpop.f32.mrf.mxu0
        %1217 = vmatprep.mubr.f32.mxu0 0.0
        %1218 = vmatmul.mubr.f32.gmra.mxu0 %v1026
        %v1219 = vpop.f32.mrf.mxu0
        %v1220 = vadd.f32 0.0, %v1219
        %v1221 = vpop.f32.mrf.mxu0
        %1222 = vmatprep.mubr.f32.mxu0 0.0
        %1223 = vmatmul.mubr.f32.gmra.mxu0 %v1029
        %v1224 = vpop.f32.mrf.mxu0
        %v1225 = vadd.f32 0.0, %v1224
        %v1226 = vpop.f32.mrf.mxu0
        %1227 = vmatprep.mubr.f32.mxu0 0.0
        %1228 = vmatmul.mubr.f32.gmra.mxu0 %v1032
        %v1229 = vpop.f32.mrf.mxu0
        %v1230 = vadd.f32 0.0, %v1229
        %v1231 = vpop.f32.mrf.mxu0
        %1232 = vmatprep.mubr.f32.mxu0 0.0
        %1233 = vmatmul.mubr.f32.gmra.mxu0 %v1035
        %v1234 = vpop.f32.mrf.mxu0
        %v1235 = vadd.f32 0.0, %v1234
        %v1236 = vpop.f32.mrf.mxu0
        %1237 = vmatprep.mubr.f32.mxu0 0.0
        %1238 = vmatmul.mubr.f32.gmra.mxu0 %v1038
        %v1239 = vpop.f32.mrf.mxu0
        %v1240 = vadd.f32 0.0, %v1239
        %v1241 = vpop.f32.mrf.mxu0
        %1242 = vmatprep.mubr.f32.mxu0 0.0
        %1243 = vmatmul.mubr.f32.gmra.mxu0 %v1041
        %v1244 = vpop.f32.mrf.mxu0
        %v1245 = vadd.f32 0.0, %v1244
        %v1246 = vpop.f32.mrf.mxu0
        %1247 = vmatprep.mubr.f32.mxu0 0.0
        %1248 = vmatmul.mubr.f32.gmra.mxu0 %v1044
        %v1249 = vpop.f32.mrf.mxu0
        %v1250 = vadd.f32 0.0, %v1249
        %v1251 = vpop.f32.mrf.mxu0
        %1252 = vmatprep.mubr.f32.mxu0 0.0
        %1253 = vmatmul.mubr.f32.gmra.mxu0 %v1047
        %v1254 = vpop.f32.mrf.mxu0
        %v1255 = vadd.f32 0.0, %v1254
        %v1256 = vpop.f32.mrf.mxu0
        %1257 = vmatprep.mubr.f32.mxu0 0.0
        %1258 = vmatmul.mubr.f32.gmra.mxu0 %v1050
        %v1259 = vpop.f32.mrf.mxu0
        %v1260 = vadd.f32 0.0, %v1259
        %v1261 = vpop.f32.mrf.mxu0
        %1262 = vmatprep.mubr.f32.mxu0 0.0
        %1263 = vmatmul.mubr.f32.gmra.mxu0 %v1053
        %v1264 = vpop.f32.mrf.mxu0
        %v1265 = vadd.f32 0.0, %v1264
        %v1266 = vpop.f32.mrf.mxu0
        %1267 = vmatprep.mubr.f32.mxu0 0.0
        %1268 = vmatmul.mubr.f32.gmra.mxu0 %v1056
        %v1269 = vpop.f32.mrf.mxu0
        %v1270 = vadd.f32 0.0, %v1269
        %v1271 = vpop.f32.mrf.mxu0
        %1272 = vmatprep.mubr.f32.mxu0 0.0
        %1273 = vmatmul.mubr.f32.gmra.mxu0 %v1059
        %v1274 = vpop.f32.mrf.mxu0
        %v1275 = vadd.f32 0.0, %v1274
        %v1276 = vpop.f32.mrf.mxu0
        %1277 = vmatprep.mubr.f32.mxu0 0.0
        %1278 = vmatmul.mubr.f32.gmra.mxu0 %v1062
        %v1279 = vpop.f32.mrf.mxu0
        %v1280 = vadd.f32 0.0, %v1279
        %v1281 = vpop.f32.mrf.mxu0
        %1282 = vmatprep.mubr.f32.mxu0 0.0
        %1283 = vmatmul.mubr.f32.gmra.mxu0 %v1065
        %v1284 = vpop.f32.mrf.mxu0
        %v1285 = vadd.f32 0.0, %v1284
        %v1286 = vpop.f32.mrf.mxu0
        %1287 = vmatprep.mubr.f32.mxu0 0.0
        %1288 = vmatmul.mubr.f32.gmra.mxu0 %v1068
        %v1289 = vpop.f32.mrf.mxu0
        %v1290 = vadd.f32 0.0, %v1289
        %v1291 = vpop.f32.mrf.mxu0
        %1292 = vmatprep.mubr.f32.mxu0 0.0
        %1293 = vmatmul.mubr.f32.gmra.mxu0 %v1071
        %v1294 = vpop.f32.mrf.mxu0
        %v1295 = vadd.f32 0.0, %v1294
        %v1296 = vpop.f32.mrf.mxu0
        %1297 = vdwg.mxu0
        %v1298 = vadd.f32 %v781, %v1140
        %v1299 = vadd.f32 %v786, %v1145
        %v1300 = vadd.f32 %v791, %v1150
        %v1301 = vadd.f32 %v796, %v1155
        %v1302 = vadd.f32 %v801, %v1160
        %v1303 = vadd.f32 %v806, %v1165
        %v1304 = vadd.f32 %v811, %v1170
        %v1305 = vadd.f32 %v816, %v1175
        %v1306 = vadd.f32 %v821, %v1180
        %v1307 = vadd.f32 %v826, %v1185
        %v1308 = vadd.f32 %v831, %v1190
        %v1309 = vadd.f32 %v836, %v1195
        %v1310 = vadd.f32 %v841, %v1200
        %v1311 = vadd.f32 %v846, %v1205
        %v1312 = vadd.f32 %v851, %v1210
        %v1313 = vadd.f32 %v856, %v1215
        %v1314 = vadd.f32 %v861, %v1220
        %v1315 = vadd.f32 %v866, %v1225
        %v1316 = vadd.f32 %v871, %v1230
        %v1317 = vadd.f32 %v876, %v1235
        %v1318 = vadd.f32 %v881, %v1240
        %v1319 = vadd.f32 %v886, %v1245
        %v1320 = vadd.f32 %v891, %v1250
        %v1321 = vadd.f32 %v896, %v1255
        %v1322 = vadd.f32 %v901, %v1260
        %v1323 = vadd.f32 %v906, %v1265
        %v1324 = vadd.f32 %v911, %v1270
        %v1325 = vadd.f32 %v916, %v1275
        %v1326 = vadd.f32 %v921, %v1280
        %v1327 = vadd.f32 %v926, %v1285
        %v1328 = vadd.f32 %v931, %v1290
        %v1329 = vadd.f32 %v936, %v1295
        %v1330 = vld [vmem:[%s941 + $0x1] sm:$0xff]
        %v1331 = vld [vmem:[%s941 + $0x9] sm:$0xff]
        %v1332 = vld [vmem:[%s941 + $0x19] sm:$0xff]
        %v1333 = vld [vmem:[%s941 + $0x21] sm:$0xff]
        %v1334 = vld [vmem:[%s941 + $0x31] sm:$0xff]
        %v1335 = vld [vmem:[%s941 + $0x39] sm:$0xff]
        %v1336 = vld [vmem:[%s941 + $0x49] sm:$0xff]
        %v1337 = vld [vmem:[%s941 + $0x51] sm:$0xff]
        %v1338 = vld [vmem:[%s941 + $0x61] sm:$0xff]
        %v1339 = vld [vmem:[%s941 + $0x69] sm:$0xff]
        %v1340 = vld [vmem:[%s941 + $0x79] sm:$0xff]
        %v1341 = vld [vmem:[%s941 + $0x81] sm:$0xff]
        %v1342 = vld [vmem:[%s941 + $0x91] sm:$0xff]
        %v1343 = vld [vmem:[%s941 + $0x99] sm:$0xff]
        %v1344 = vld [vmem:[%s941 + $0xa9] sm:$0xff]
        %v1345 = vld [vmem:[%s941 + $0xb1] sm:$0xff]
        %v1346 = vld [vmem:[%s941 + $0xc1] sm:$0xff]
        %v1347 = vld [vmem:[%s941 + $0xc9] sm:$0xff]
        %v1348 = vld [vmem:[%s941 + $0xd9] sm:$0xff]
        %v1349 = vld [vmem:[%s941 + $0xe1] sm:$0xff]
        %v1350 = vld [vmem:[%s941 + $0xf1] sm:$0xff]
        %v1351 = vld [vmem:[%s941 + $0xf9] sm:$0xff]
        %v1352 = vld [vmem:[%s941 + $0x109] sm:$0xff]
        %v1353 = vld [vmem:[%s941 + $0x111] sm:$0xff]
        %v1354 = vld [vmem:[%s941 + $0x121] sm:$0xff]
        %v1355 = vld [vmem:[%s941 + $0x129] sm:$0xff]
        %v1356 = vld [vmem:[%s941 + $0x139] sm:$0xff]
        %v1357 = vld [vmem:[%s941 + $0x141] sm:$0xff]
        %v1358 = vld [vmem:[%s941 + $0x151] sm:$0xff]
        %v1359 = vld [vmem:[%s941 + $0x159] sm:$0xff]
        %v1360 = vld [vmem:[%s941 + $0x169] sm:$0xff]
        %v1361 = vld [vmem:[%s941 + $0x171] sm:$0xff]
        %s1362 = scalar_lea.vmem %s219, 48
        %v1363 = vld [vmem:[%s1362] sm:$0xff]
        %v1364 = vld [vmem:[%s1362 + $0x8] sm:$0xff]
        %v1366 = vsel %vm296, %v1330, 0
        %v1369 = vsel %vm296, %v1331, 0
        %v1372 = vsel %vm296, %v1332, 0
        %v1375 = vsel %vm296, %v1333, 0
        %v1378 = vsel %vm296, %v1334, 0
        %v1381 = vsel %vm296, %v1335, 0
        %v1384 = vsel %vm296, %v1336, 0
        %v1387 = vsel %vm296, %v1337, 0
        %v1390 = vsel %vm296, %v1338, 0
        %v1393 = vsel %vm296, %v1339, 0
        %v1396 = vsel %vm296, %v1340, 0
        %v1399 = vsel %vm296, %v1341, 0
        %v1402 = vsel %vm296, %v1342, 0
        %v1405 = vsel %vm296, %v1343, 0
        %v1408 = vsel %vm296, %v1344, 0
        %v1411 = vsel %vm296, %v1345, 0
        %v1414 = vsel %vm296, %v1346, 0
        %v1417 = vsel %vm296, %v1347, 0
        %v1420 = vsel %vm296, %v1348, 0
        %v1423 = vsel %vm296, %v1349, 0
        %v1426 = vsel %vm296, %v1350, 0
        %v1429 = vsel %vm296, %v1351, 0
        %v1432 = vsel %vm296, %v1352, 0
        %v1435 = vsel %vm296, %v1353, 0
        %v1438 = vsel %vm296, %v1354, 0
        %v1441 = vsel %vm296, %v1355, 0
        %v1444 = vsel %vm296, %v1356, 0
        %v1447 = vsel %vm296, %v1357, 0
        %v1450 = vsel %vm296, %v1358, 0
        %v1453 = vsel %vm296, %v1359, 0
        %v1456 = vsel %vm296, %v1360, 0
        %v1459 = vsel %vm296, %v1361, 0
        %1461 = vmatprep.subr.mxu0 0.0
        %1462 = vmatpush1.msra.mxu0 0.0
        %1463 = vmatprep.subr.mxu0 0.0
        %1464 = vmatpush1.msra.mxu0 0.0
        %1465 = vmatprep.subr.mxu0 0.0
        %1466 = vmatpush1.msra.mxu0 0.0
        %1467 = vmatprep.subr.mxu0 0.0
        %1468 = vmatpush1.msra.mxu0 0.0
        %1469 = vmatprep.subr.mxu0 0.0
        %1470 = vmatpush1.msra.mxu0 0.0
        %1471 = vmatprep.subr.mxu0 0.0
        %1472 = vmatpush1.msra.mxu0 0.0
        %1473 = vmatprep.subr.mxu0 0.0
        %1474 = vmatpush1.msra.mxu0 0.0
        %1475 = vmatprep.subr.mxu0 0.0
        %1476 = vmatpush1.msra.mxu0 0.0
        %1477 = vmatprep.subr.mxu0 0.0
        %1478 = vmatpush1.msra.mxu0 0.0
        %1479 = vmatprep.subr.mxu0 0.0
        %1480 = vmatpush1.msra.mxu0 0.0
        %1481 = vmatprep.subr.mxu0 0.0
        %1482 = vmatpush1.msra.mxu0 0.0
        %1483 = vmatprep.subr.mxu0 0.0
        %1484 = vmatpush1.msra.mxu0 0.0
        %1485 = vmatprep.subr.mxu0 0.0
        %1486 = vmatpush1.msra.mxu0 0.0
        %1487 = vmatprep.subr.mxu0 0.0
        %1488 = vmatpush1.msra.mxu0 0.0
        %1489 = vmatprep.subr.mxu0 0.0
        %1490 = vmatpush1.msra.mxu0 %v1364
        %1491 = vmatprep.subr.mxu0 0.0
        %1492 = vmatpush1.msra.mxu0 %v1363
        %1493 = vmatprep.subr.mxu0 0.0
        %1494 = vmatpush2.msra.mxu0 0.0
        %1495 = vmatprep.subr.mxu0 0.0
        %1496 = vmatpush2.msra.mxu0 0.0
        %1497 = vmatprep.subr.mxu0 0.0
        %1498 = vmatpush2.msra.mxu0 0.0
        %1499 = vmatprep.subr.mxu0 0.0
        %1500 = vmatpush2.msra.mxu0 0.0
        %1501 = vmatprep.subr.mxu0 0.0
        %1502 = vmatpush2.msra.mxu0 0.0
        %1503 = vmatprep.subr.mxu0 0.0
        %1504 = vmatpush2.msra.mxu0 0.0
        %1505 = vmatprep.subr.mxu0 0.0
        %1506 = vmatpush2.msra.mxu0 0.0
        %1507 = vmatprep.subr.mxu0 0.0
        %1508 = vmatpush2.msra.mxu0 0.0
        %1509 = vmatprep.subr.mxu0 0.0
        %1510 = vmatpush2.msra.mxu0 0.0
        %1511 = vmatprep.subr.mxu0 0.0
        %1512 = vmatpush2.msra.mxu0 0.0
        %1513 = vmatprep.subr.mxu0 0.0
        %1514 = vmatpush2.msra.mxu0 0.0
        %1515 = vmatprep.subr.mxu0 0.0
        %1516 = vmatpush2.msra.mxu0 0.0
        %1517 = vmatprep.subr.mxu0 0.0
        %1518 = vmatpush2.msra.mxu0 0.0
        %1519 = vmatprep.subr.mxu0 0.0
        %1520 = vmatpush2.msra.mxu0 0.0
        %1521 = vmatprep.subr.mxu0 0.0
        %1522 = vmatpush2.msra.mxu0 0.0
        %1523 = vmatprep.subr.mxu0 0.0
        %1524 = vmatpush2.msra.mxu0 0.0
        %1525 = vmatprep.mubr.f32.mxu0 0.0
        %1526 = vmatmul.mubr.f32.gmra.mxu0 %v1366
        %v1527 = vpop.f32.mrf.mxu0
        %v1528 = vadd.f32 0.0, %v1527
        %v1529 = vpop.f32.mrf.mxu0
        %1530 = vmatprep.mubr.f32.mxu0 0.0
        %1531 = vmatmul.mubr.f32.gmra.mxu0 %v1369
        %v1532 = vpop.f32.mrf.mxu0
        %v1533 = vadd.f32 0.0, %v1532
        %v1534 = vpop.f32.mrf.mxu0
        %1535 = vmatprep.mubr.f32.mxu0 0.0
        %1536 = vmatmul.mubr.f32.gmra.mxu0 %v1372
        %v1537 = vpop.f32.mrf.mxu0
        %v1538 = vadd.f32 0.0, %v1537
        %v1539 = vpop.f32.mrf.mxu0
        %1540 = vmatprep.mubr.f32.mxu0 0.0
        %1541 = vmatmul.mubr.f32.gmra.mxu0 %v1375
        %v1542 = vpop.f32.mrf.mxu0
        %v1543 = vadd.f32 0.0, %v1542
        %v1544 = vpop.f32.mrf.mxu0
        %1545 = vmatprep.mubr.f32.mxu0 0.0
        %1546 = vmatmul.mubr.f32.gmra.mxu0 %v1378
        %v1547 = vpop.f32.mrf.mxu0
        %v1548 = vadd.f32 0.0, %v1547
        %v1549 = vpop.f32.mrf.mxu0
        %1550 = vmatprep.mubr.f32.mxu0 0.0
        %1551 = vmatmul.mubr.f32.gmra.mxu0 %v1381
        %v1552 = vpop.f32.mrf.mxu0
        %v1553 = vadd.f32 0.0, %v1552
        %v1554 = vpop.f32.mrf.mxu0
        %1555 = vmatprep.mubr.f32.mxu0 0.0
        %1556 = vmatmul.mubr.f32.gmra.mxu0 %v1384
        %v1557 = vpop.f32.mrf.mxu0
        %v1558 = vadd.f32 0.0, %v1557
        %v1559 = vpop.f32.mrf.mxu0
        %1560 = vmatprep.mubr.f32.mxu0 0.0
        %1561 = vmatmul.mubr.f32.gmra.mxu0 %v1387
        %v1562 = vpop.f32.mrf.mxu0
        %v1563 = vadd.f32 0.0, %v1562
        %v1564 = vpop.f32.mrf.mxu0
        %1565 = vmatprep.mubr.f32.mxu0 0.0
        %1566 = vmatmul.mubr.f32.gmra.mxu0 %v1390
        %v1567 = vpop.f32.mrf.mxu0
        %v1568 = vadd.f32 0.0, %v1567
        %v1569 = vpop.f32.mrf.mxu0
        %1570 = vmatprep.mubr.f32.mxu0 0.0
        %1571 = vmatmul.mubr.f32.gmra.mxu0 %v1393
        %v1572 = vpop.f32.mrf.mxu0
        %v1573 = vadd.f32 0.0, %v1572
        %v1574 = vpop.f32.mrf.mxu0
        %1575 = vmatprep.mubr.f32.mxu0 0.0
        %1576 = vmatmul.mubr.f32.gmra.mxu0 %v1396
        %v1577 = vpop.f32.mrf.mxu0
        %v1578 = vadd.f32 0.0, %v1577
        %v1579 = vpop.f32.mrf.mxu0
        %1580 = vmatprep.mubr.f32.mxu0 0.0
        %1581 = vmatmul.mubr.f32.gmra.mxu0 %v1399
        %v1582 = vpop.f32.mrf.mxu0
        %v1583 = vadd.f32 0.0, %v1582
        %v1584 = vpop.f32.mrf.mxu0
        %1585 = vmatprep.mubr.f32.mxu0 0.0
        %1586 = vmatmul.mubr.f32.gmra.mxu0 %v1402
        %v1587 = vpop.f32.mrf.mxu0
        %v1588 = vadd.f32 0.0, %v1587
        %v1589 = vpop.f32.mrf.mxu0
        %1590 = vmatprep.mubr.f32.mxu0 0.0
        %1591 = vmatmul.mubr.f32.gmra.mxu0 %v1405
        %v1592 = vpop.f32.mrf.mxu0
        %v1593 = vadd.f32 0.0, %v1592
        %v1594 = vpop.f32.mrf.mxu0
        %1595 = vmatprep.mubr.f32.mxu0 0.0
        %1596 = vmatmul.mubr.f32.gmra.mxu0 %v1408
        %v1597 = vpop.f32.mrf.mxu0
        %v1598 = vadd.f32 0.0, %v1597
        %v1599 = vpop.f32.mrf.mxu0
        %1600 = vmatprep.mubr.f32.mxu0 0.0
        %1601 = vmatmul.mubr.f32.gmra.mxu0 %v1411
        %v1602 = vpop.f32.mrf.mxu0
        %v1603 = vadd.f32 0.0, %v1602
        %v1604 = vpop.f32.mrf.mxu0
        %1605 = vmatprep.mubr.f32.mxu0 0.0
        %1606 = vmatmul.mubr.f32.gmra.mxu0 %v1414
        %v1607 = vpop.f32.mrf.mxu0
        %v1608 = vadd.f32 0.0, %v1607
        %v1609 = vpop.f32.mrf.mxu0
        %1610 = vmatprep.mubr.f32.mxu0 0.0
        %1611 = vmatmul.mubr.f32.gmra.mxu0 %v1417
        %v1612 = vpop.f32.mrf.mxu0
        %v1613 = vadd.f32 0.0, %v1612
        %v1614 = vpop.f32.mrf.mxu0
        %1615 = vmatprep.mubr.f32.mxu0 0.0
        %1616 = vmatmul.mubr.f32.gmra.mxu0 %v1420
        %v1617 = vpop.f32.mrf.mxu0
        %v1618 = vadd.f32 0.0, %v1617
        %v1619 = vpop.f32.mrf.mxu0
        %1620 = vmatprep.mubr.f32.mxu0 0.0
        %1621 = vmatmul.mubr.f32.gmra.mxu0 %v1423
        %v1622 = vpop.f32.mrf.mxu0
        %v1623 = vadd.f32 0.0, %v1622
        %v1624 = vpop.f32.mrf.mxu0
        %1625 = vmatprep.mubr.f32.mxu0 0.0
        %1626 = vmatmul.mubr.f32.gmra.mxu0 %v1426
        %v1627 = vpop.f32.mrf.mxu0
        %v1628 = vadd.f32 0.0, %v1627
        %v1629 = vpop.f32.mrf.mxu0
        %1630 = vmatprep.mubr.f32.mxu0 0.0
        %1631 = vmatmul.mubr.f32.gmra.mxu0 %v1429
        %v1632 = vpop.f32.mrf.mxu0
        %v1633 = vadd.f32 0.0, %v1632
        %v1634 = vpop.f32.mrf.mxu0
        %1635 = vmatprep.mubr.f32.mxu0 0.0
        %1636 = vmatmul.mubr.f32.gmra.mxu0 %v1432
        %v1637 = vpop.f32.mrf.mxu0
        %v1638 = vadd.f32 0.0, %v1637
        %v1639 = vpop.f32.mrf.mxu0
        %1640 = vmatprep.mubr.f32.mxu0 0.0
        %1641 = vmatmul.mubr.f32.gmra.mxu0 %v1435
        %v1642 = vpop.f32.mrf.mxu0
        %v1643 = vadd.f32 0.0, %v1642
        %v1644 = vpop.f32.mrf.mxu0
        %1645 = vmatprep.mubr.f32.mxu0 0.0
        %1646 = vmatmul.mubr.f32.gmra.mxu0 %v1438
        %v1647 = vpop.f32.mrf.mxu0
        %v1648 = vadd.f32 0.0, %v1647
        %v1649 = vpop.f32.mrf.mxu0
        %1650 = vmatprep.mubr.f32.mxu0 0.0
        %1651 = vmatmul.mubr.f32.gmra.mxu0 %v1441
        %v1652 = vpop.f32.mrf.mxu0
        %v1653 = vadd.f32 0.0, %v1652
        %v1654 = vpop.f32.mrf.mxu0
        %1655 = vmatprep.mubr.f32.mxu0 0.0
        %1656 = vmatmul.mubr.f32.gmra.mxu0 %v1444
        %v1657 = vpop.f32.mrf.mxu0
        %v1658 = vadd.f32 0.0, %v1657
        %v1659 = vpop.f32.mrf.mxu0
        %1660 = vmatprep.mubr.f32.mxu0 0.0
        %1661 = vmatmul.mubr.f32.gmra.mxu0 %v1447
        %v1662 = vpop.f32.mrf.mxu0
        %v1663 = vadd.f32 0.0, %v1662
        %v1664 = vpop.f32.mrf.mxu0
        %1665 = vmatprep.mubr.f32.mxu0 0.0
        %1666 = vmatmul.mubr.f32.gmra.mxu0 %v1450
        %v1667 = vpop.f32.mrf.mxu0
        %v1668 = vadd.f32 0.0, %v1667
        %v1669 = vpop.f32.mrf.mxu0
        %1670 = vmatprep.mubr.f32.mxu0 0.0
        %1671 = vmatmul.mubr.f32.gmra.mxu0 %v1453
        %v1672 = vpop.f32.mrf.mxu0
        %v1673 = vadd.f32 0.0, %v1672
        %v1674 = vpop.f32.mrf.mxu0
        %1675 = vmatprep.mubr.f32.mxu0 0.0
        %1676 = vmatmul.mubr.f32.gmra.mxu0 %v1456
        %v1677 = vpop.f32.mrf.mxu0
        %v1678 = vadd.f32 0.0, %v1677
        %v1679 = vpop.f32.mrf.mxu0
        %1680 = vmatprep.mubr.f32.mxu0 0.0
        %1681 = vmatmul.mubr.f32.gmra.mxu0 %v1459
        %v1682 = vpop.f32.mrf.mxu0
        %v1683 = vadd.f32 0.0, %v1682
        %v1684 = vpop.f32.mrf.mxu0
        %1685 = vdwg.mxu0
        %v1686 = vadd.f32 %v1298, %v1528
        %v1687 = vadd.f32 %v1299, %v1533
        %v1688 = vadd.f32 %v1300, %v1538
        %v1689 = vadd.f32 %v1301, %v1543
        %v1690 = vadd.f32 %v1302, %v1548
        %v1691 = vadd.f32 %v1303, %v1553
        %v1692 = vadd.f32 %v1304, %v1558
        %v1693 = vadd.f32 %v1305, %v1563
        %v1694 = vadd.f32 %v1306, %v1568
        %v1695 = vadd.f32 %v1307, %v1573
        %v1696 = vadd.f32 %v1308, %v1578
        %v1697 = vadd.f32 %v1309, %v1583
        %v1698 = vadd.f32 %v1310, %v1588
        %v1699 = vadd.f32 %v1311, %v1593
        %v1700 = vadd.f32 %v1312, %v1598
        %v1701 = vadd.f32 %v1313, %v1603
        %v1702 = vadd.f32 %v1314, %v1608
        %v1703 = vadd.f32 %v1315, %v1613
        %v1704 = vadd.f32 %v1316, %v1618
        %v1705 = vadd.f32 %v1317, %v1623
        %v1706 = vadd.f32 %v1318, %v1628
        %v1707 = vadd.f32 %v1319, %v1633
        %v1708 = vadd.f32 %v1320, %v1638
        %v1709 = vadd.f32 %v1321, %v1643
        %v1710 = vadd.f32 %v1322, %v1648
        %v1711 = vadd.f32 %v1323, %v1653
        %v1712 = vadd.f32 %v1324, %v1658
        %v1713 = vadd.f32 %v1325, %v1663
        %v1714 = vadd.f32 %v1326, %v1668
        %v1715 = vadd.f32 %v1327, %v1673
        %v1716 = vadd.f32 %v1328, %v1678
        %v1717 = vadd.f32 %v1329, %v1683
        %v1718 = vld [vmem:[%s222] sm:$0x1]
        %v1720 = vlaneseq
        %v1721 = vshrl.u32 %v1720, 7
        %v1722 = vsub.s32 0, %v1721
        %v1723 = vrot.slane %v1718, %v1722
        %v1725 = vadd.f32 %v1686, %v1723
        %v1726 = vadd.f32 %v1687, %v1723
        %v1727 = vadd.f32 %v1688, %v1723
        %v1728 = vadd.f32 %v1689, %v1723
        %v1729 = vadd.f32 %v1690, %v1723
        %v1730 = vadd.f32 %v1691, %v1723
        %v1731 = vadd.f32 %v1692, %v1723
        %v1732 = vadd.f32 %v1693, %v1723
        %v1733 = vadd.f32 %v1694, %v1723
        %v1734 = vadd.f32 %v1695, %v1723
        %v1735 = vadd.f32 %v1696, %v1723
        %v1736 = vadd.f32 %v1697, %v1723
        %v1737 = vadd.f32 %v1698, %v1723
        %v1738 = vadd.f32 %v1699, %v1723
        %v1739 = vadd.f32 %v1700, %v1723
        %v1740 = vadd.f32 %v1701, %v1723
        %v1741 = vadd.f32 %v1702, %v1723
        %v1742 = vadd.f32 %v1703, %v1723
        %v1743 = vadd.f32 %v1704, %v1723
        %v1744 = vadd.f32 %v1705, %v1723
        %v1745 = vadd.f32 %v1706, %v1723
        %v1746 = vadd.f32 %v1707, %v1723
        %v1747 = vadd.f32 %v1708, %v1723
        %v1748 = vadd.f32 %v1709, %v1723
        %v1749 = vadd.f32 %v1710, %v1723
        %v1750 = vadd.f32 %v1711, %v1723
        %v1751 = vadd.f32 %v1712, %v1723
        %v1752 = vadd.f32 %v1713, %v1723
        %v1753 = vadd.f32 %v1714, %v1723
        %v1754 = vadd.f32 %v1715, %v1723
        %v1755 = vadd.f32 %v1716, %v1723
        %v1756 = vadd.f32 %v1717, %v1723
        %vm1757 = vcmp.ge.f32.partialorder %v1725, 0.0
        %vm1758 = vcmp.ge.f32.partialorder %v1726, 0.0
        %vm1759 = vcmp.ge.f32.partialorder %v1727, 0.0
        %vm1760 = vcmp.ge.f32.partialorder %v1728, 0.0
        %vm1761 = vcmp.ge.f32.partialorder %v1729, 0.0
        %vm1762 = vcmp.ge.f32.partialorder %v1730, 0.0
        %vm1763 = vcmp.ge.f32.partialorder %v1731, 0.0
        %vm1764 = vcmp.ge.f32.partialorder %v1732, 0.0
        %vm1765 = vcmp.ge.f32.partialorder %v1733, 0.0
        %vm1766 = vcmp.ge.f32.partialorder %v1734, 0.0
        %vm1767 = vcmp.ge.f32.partialorder %v1735, 0.0
        %vm1768 = vcmp.ge.f32.partialorder %v1736, 0.0
        %vm1769 = vcmp.ge.f32.partialorder %v1737, 0.0
        %vm1770 = vcmp.ge.f32.partialorder %v1738, 0.0
        %vm1771 = vcmp.ge.f32.partialorder %v1739, 0.0
        %vm1772 = vcmp.ge.f32.partialorder %v1740, 0.0
        %vm1773 = vcmp.ge.f32.partialorder %v1741, 0.0
        %vm1774 = vcmp.ge.f32.partialorder %v1742, 0.0
        %vm1775 = vcmp.ge.f32.partialorder %v1743, 0.0
        %vm1776 = vcmp.ge.f32.partialorder %v1744, 0.0
        %vm1777 = vcmp.ge.f32.partialorder %v1745, 0.0
        %vm1778 = vcmp.ge.f32.partialorder %v1746, 0.0
        %vm1779 = vcmp.ge.f32.partialorder %v1747, 0.0
        %vm1780 = vcmp.ge.f32.partialorder %v1748, 0.0
        %vm1781 = vcmp.ge.f32.partialorder %v1749, 0.0
        %vm1782 = vcmp.ge.f32.partialorder %v1750, 0.0
        %vm1783 = vcmp.ge.f32.partialorder %v1751, 0.0
        %vm1784 = vcmp.ge.f32.partialorder %v1752, 0.0
        %vm1785 = vcmp.ge.f32.partialorder %v1753, 0.0
        %vm1786 = vcmp.ge.f32.partialorder %v1754, 0.0
        %vm1787 = vcmp.ge.f32.partialorder %v1755, 0.0
        %vm1788 = vcmp.ge.f32.partialorder %v1756, 0.0
        %v1789 = vmul.f32 %v1725, 0.2
        %v1790 = vmul.f32 %v1726, 0.2
        %v1791 = vmul.f32 %v1727, 0.2
        %v1792 = vmul.f32 %v1728, 0.2
        %v1793 = vmul.f32 %v1729, 0.2
        %v1794 = vmul.f32 %v1730, 0.2
        %v1795 = vmul.f32 %v1731, 0.2
        %v1796 = vmul.f32 %v1732, 0.2
        %v1797 = vmul.f32 %v1733, 0.2
        %v1798 = vmul.f32 %v1734, 0.2
        %v1799 = vmul.f32 %v1735, 0.2
        %v1800 = vmul.f32 %v1736, 0.2
        %v1801 = vmul.f32 %v1737, 0.2
        %v1802 = vmul.f32 %v1738, 0.2
        %v1803 = vmul.f32 %v1739, 0.2
        %v1804 = vmul.f32 %v1740, 0.2
        %v1805 = vmul.f32 %v1741, 0.2
        %v1806 = vmul.f32 %v1742, 0.2
        %v1807 = vmul.f32 %v1743, 0.2
        %v1808 = vmul.f32 %v1744, 0.2
        %v1809 = vmul.f32 %v1745, 0.2
        %v1810 = vmul.f32 %v1746, 0.2
        %v1811 = vmul.f32 %v1747, 0.2
        %v1812 = vmul.f32 %v1748, 0.2
        %v1813 = vmul.f32 %v1749, 0.2
        %v1814 = vmul.f32 %v1750, 0.2
        %v1815 = vmul.f32 %v1751, 0.2
        %v1816 = vmul.f32 %v1752, 0.2
        %v1817 = vmul.f32 %v1753, 0.2
        %v1818 = vmul.f32 %v1754, 0.2
        %v1819 = vmul.f32 %v1755, 0.2
        %v1820 = vmul.f32 %v1756, 0.2
        %v1821 = vsel %vm1757, %v1725, %v1789
        %v1822 = vsel %vm1758, %v1726, %v1790
        %v1823 = vsel %vm1759, %v1727, %v1791
        %v1824 = vsel %vm1760, %v1728, %v1792
        %v1825 = vsel %vm1761, %v1729, %v1793
        %v1826 = vsel %vm1762, %v1730, %v1794
        %v1827 = vsel %vm1763, %v1731, %v1795
        %v1828 = vsel %vm1764, %v1732, %v1796
        %v1829 = vsel %vm1765, %v1733, %v1797
        %v1830 = vsel %vm1766, %v1734, %v1798
        %v1831 = vsel %vm1767, %v1735, %v1799
        %v1832 = vsel %vm1768, %v1736, %v1800
        %v1833 = vsel %vm1769, %v1737, %v1801
        %v1834 = vsel %vm1770, %v1738, %v1802
        %v1835 = vsel %vm1771, %v1739, %v1803
        %v1836 = vsel %vm1772, %v1740, %v1804
        %v1837 = vsel %vm1773, %v1741, %v1805
        %v1838 = vsel %vm1774, %v1742, %v1806
        %v1839 = vsel %vm1775, %v1743, %v1807
        %v1840 = vsel %vm1776, %v1744, %v1808
        %v1841 = vsel %vm1777, %v1745, %v1809
        %v1842 = vsel %vm1778, %v1746, %v1810
        %v1843 = vsel %vm1779, %v1747, %v1811
        %v1844 = vsel %vm1780, %v1748, %v1812
        %v1845 = vsel %vm1781, %v1749, %v1813
        %v1846 = vsel %vm1782, %v1750, %v1814
        %v1847 = vsel %vm1783, %v1751, %v1815
        %v1848 = vsel %vm1784, %v1752, %v1816
        %v1849 = vsel %vm1785, %v1753, %v1817
        %v1850 = vsel %vm1786, %v1754, %v1818
        %v1851 = vsel %vm1787, %v1755, %v1819
        %v1852 = vsel %vm1788, %v1756, %v1820
        %1853 = vst [vmem:[%s210] sm:$0xff] %v1821
        %1854 = vst [vmem:[%s210 + $0x8] sm:$0xff] %v1822
        %1855 = vst [vmem:[%s210 + $0x10] sm:$0xff] %v1823
        %1856 = vst [vmem:[%s210 + $0x18] sm:$0xff] %v1824
        %1857 = vst [vmem:[%s210 + $0x20] sm:$0xff] %v1825
        %1858 = vst [vmem:[%s210 + $0x28] sm:$0xff] %v1826
        %1859 = vst [vmem:[%s210 + $0x30] sm:$0xff] %v1827
        %1860 = vst [vmem:[%s210 + $0x38] sm:$0xff] %v1828
        %1861 = vst [vmem:[%s210 + $0x40] sm:$0xff] %v1829
        %1862 = vst [vmem:[%s210 + $0x48] sm:$0xff] %v1830
        %1863 = vst [vmem:[%s210 + $0x50] sm:$0xff] %v1831
        %1864 = vst [vmem:[%s210 + $0x58] sm:$0xff] %v1832
        %1865 = vst [vmem:[%s210 + $0x60] sm:$0xff] %v1833
        %1866 = vst [vmem:[%s210 + $0x68] sm:$0xff] %v1834
        %1867 = vst [vmem:[%s210 + $0x70] sm:$0xff] %v1835
        %1868 = vst [vmem:[%s210 + $0x78] sm:$0xff] %v1836
        %1869 = vst [vmem:[%s210 + $0x80] sm:$0xff] %v1837
        %1870 = vst [vmem:[%s210 + $0x88] sm:$0xff] %v1838
        %1871 = vst [vmem:[%s210 + $0x90] sm:$0xff] %v1839
        %1872 = vst [vmem:[%s210 + $0x98] sm:$0xff] %v1840
        %1873 = vst [vmem:[%s210 + $0xa0] sm:$0xff] %v1841
        %1874 = vst [vmem:[%s210 + $0xa8] sm:$0xff] %v1842
        %1875 = vst [vmem:[%s210 + $0xb0] sm:$0xff] %v1843
        %1876 = vst [vmem:[%s210 + $0xb8] sm:$0xff] %v1844
        %1877 = vst [vmem:[%s210 + $0xc0] sm:$0xff] %v1845
        %1878 = vst [vmem:[%s210 + $0xc8] sm:$0xff] %v1846
        %1879 = vst [vmem:[%s210 + $0xd0] sm:$0xff] %v1847
        %1880 = vst [vmem:[%s210 + $0xd8] sm:$0xff] %v1848
        %1881 = vst [vmem:[%s210 + $0xe0] sm:$0xff] %v1849
        %1882 = vst [vmem:[%s210 + $0xe8] sm:$0xff] %v1850
        %1883 = vst [vmem:[%s210 + $0xf0] sm:$0xff] %v1851
        %1884 = vst [vmem:[%s210 + $0xf8] sm:$0xff] %v1852
        %s1885 = sand.u32 %s126, 1
        %s1886 = scalar_lea.sflag [#allocation3], %s1885
        %s1887 = sand.u32 %s126, 1
        %s1888 = smul.addr %s1887, 256
        %s1889 = scalar_lea.vmem [#allocation2], %s1888
        // Predicated region
        $region33: #{tpu_custom_call.1} parent=31 // pred_check
          %p1890 = pneg %p136
        $region34: #{tpu_custom_call.1} parent=31 // pred_check_branch
          %1892 = sbr.rel (%p1890) target = $region36
        $region35: #{tpu_custom_call.1} parent=31 // pred_region
          %s1893 = smul.u32 16, %s24
          %s1895 = ssub.s32 4096, 4096
          %1896 = vsyncadd %s1886, %s1895
          %s1897 = smul.addr %s1893, 2
          %s1898 = sadd.s32 %s22, %s1897
          %s1899 = smul.addr %s23, 32
          %s1900 = sadd.s32 %s1898, %s1899
          %s1901 = smul.addr %s1900, 128
          %s1902 = scalar_lea.hbm %s3, %s1901
          %s1903 = sshll.u32 %s1889, 4
          %s1904 = int_to_ptr.vmem [resolvable:$true] %s1903
          %1909 = dma.vmem_to_hbm [thread:$0]  %s1904, 4096, %s1902, %s1886, 128, 128, 8
        $region36: #{tpu_custom_call.1} parent=31 // pred_fallthru
          _
      $region32: #{tpu_custom_call.1} parent=5 // pred_fallthru
        _
      %p1910 = scmp.le.s32.totalorder 2, %s12
      // Predicated region
      $region37: #{tpu_custom_call.1} parent=5 // pred_check
        %p1911 = pneg %p1910
      $region38: #{tpu_custom_call.1} parent=5 // pred_check_branch
        %1913 = sbr.rel (%p1911) target = $region40
      $region39: #{tpu_custom_call.1} parent=5 // pred_region
        %s1914 = ssub.s32 %s12, 2
        // Predicated region
        $region41: #{tpu_custom_call.1} parent=39 // pred_check
          %p1915 = pneg %p142
        $region42: #{tpu_custom_call.1} parent=39 // pred_check_branch
          %1917 = sbr.rel (%p1915) target = $region44
        $region43: #{tpu_custom_call.1} parent=39 // pred_region
          %s1918 = sand.u32 %s127, 1
          %s1919 = scalar_lea.sflag [#allocation3], %s1918
          %s1920 = sand.u32 %s127, 1
          %s1921 = smul.addr %s1920, 256
          %s1922 = scalar_lea.vmem [#allocation2], %s1921
          %1923 = dma.done %s1919, 4096
        $region44: #{tpu_custom_call.1} parent=39 // pred_fallthru
          _
      $region40: #{tpu_custom_call.1} parent=5 // pred_fallthru
        _
    $region6: #{tpu_custom_call.1} parent=1 // loop_footer
      %s16 = sadd.s32 1, %s12
    $region7: #{tpu_custom_call.1} parent=1 // loop_footer_branch
      %11 = sbr.rel target = $region3
    $region8: #{tpu_custom_call.1} parent=1 // loop_exit
      _
    %1924 = vsyncpa [#allocation3], 1
    %s1925 = scalar_lea.sflag [#allocation3], 1
    %1926 = vsyncpa %s1925, 1

</llo_original>
